<compile_context>
chip_gen: v7x
topology: tpu7x:2x2x1
jax: 0.10.0
libtpu: 0.0.40
codegen_flags: <defaults>
</compile_context>

<pallas_src>
import math
import functools

import jax
import jax.numpy as jnp
from jax import lax
from jax.experimental import pallas as pl
from jax.experimental.pallas import tpu as pltpu


# ----------------------------------------------------------------------------
# Fused Pallas kernel: one batch element per grid step
# ----------------------------------------------------------------------------
def _fused_performer_kernel(x_ref, wqkv_ref, projbd_ref, wo_ref, bo_ref, o_ref,
                            *, heads, eps):
    f32 = jnp.float32
    x = x_ref[0]                               # (N, DIM)
    n = x.shape[0]
    dim = o_ref.shape[2]
    inner = wo_ref.shape[0]                    # heads * dim_head
    dh = inner // heads
    m = projbd_ref.shape[1] // heads           # nb_features

    data_normalizer = dh ** -0.25
    ratio = m ** -0.5

    # ---- fused QKV projection (to_q / to_k / to_v, qkv_bias=False -> no bias add) ----
    qkv = jnp.dot(x, wqkv_ref[...], preferred_element_type=f32)      # (N, 3*inner)
    q = qkv[:, :inner] * data_normalizer                             # scaled queries
    k = qkv[:, inner:2 * inner] * data_normalizer                    # scaled keys
    v = qkv[:, 2 * inner:]                                           # values (unscaled)

    # ---- FAVOR+ features: kron(I_H, proj.T) computes every head's dash in one matmul ----
    q_dash = jnp.dot(q, projbd_ref[...], preferred_element_type=f32)  # (N, H*M)
    k_dash = jnp.dot(k, projbd_ref[...], preferred_element_type=f32)  # (N, H*M)
    k_gmax = jnp.max(k_dash)       # per-batch global key stabilizer (matches reference)

    wo = wo_ref[...]                                                  # (inner, DIM)
    y = jnp.zeros((n, dim), f32)

    # Static unroll over heads; every slice below is a compile-time lane/sublane slice.
    for h in range(heads):
        qs = q[:, h * dh:(h + 1) * dh]                                # (N, Dh), already * dn
        ks = k[:, h * dh:(h + 1) * dh]
        vh = v[:, h * dh:(h + 1) * dh]
        qd = q_dash[:, h * m:(h + 1) * m]                             # (N, M)
        kd = k_dash[:, h * m:(h + 1) * m]

        diag_q = 0.5 * jnp.sum(qs * qs, axis=-1, keepdims=True)       # (N, 1)
        diag_k = 0.5 * jnp.sum(ks * ks, axis=-1, keepdims=True)

        # queries: per-row stabilizer; keys: per-batch global max
        q_prime = ratio * (jnp.exp(qd - diag_q
                                   - jnp.max(qd, axis=-1, keepdims=True)) + eps)
        k_prime = ratio * (jnp.exp(kd - diag_k - k_gmax) + eps)

        # non-causal linear attention
        context = lax.dot_general(k_prime, vh, (((0,), (0,)), ((), ())),
                                  preferred_element_type=f32)          # (M, Dh)
        k_cumsum = jnp.sum(k_prime, axis=0, keepdims=True)             # (1, M)
        denom = jnp.sum(q_prime * k_cumsum, axis=-1, keepdims=True)    # (N, 1)
        out_h = jnp.dot(q_prime, context, preferred_element_type=f32)  # (N, Dh)
        out_h = out_h * pl.reciprocal(denom, approx=True)              # EUP reciprocal

        # to_out: accumulate this head's slice of the output projection (no concat needed)
        y = y + jnp.dot(out_h, wo[h * dh:(h + 1) * dh, :],
                        preferred_element_type=f32)

    # merged-head, lane-dense output store; dropout(p=0.0) is identity
    o_ref[0] = y + bo_ref[...]


def self_attention_forward(x, params, heads, eps=1e-4):
    """x: (B, N, DIM) -> (B, N, DIM), whole forward in one fused Pallas kernel."""
    B, N, dim = x.shape
    wq, wk, wv = params["wq"], params["wk"], params["wv"]
    inner = wq.shape[0]
    assert dim % heads == 0 and inner % heads == 0
    proj = params["proj"]                       # (M, Dh)
    M = proj.shape[0]
    f32 = jnp.float32

    # One-time host-side weight prep (outside the kernel loop):
    wqkv = jnp.concatenate([wq, wk, wv], axis=0).T.astype(f32)            # (dim, 3*inner)
    proj_bd = jnp.kron(jnp.eye(heads, dtype=f32), proj.T.astype(f32))     # (inner, heads*M)
    wo_t = params["wo"].T.astype(f32)                                     # (inner, dim)
    bo = params["bo"].reshape(1, dim).astype(f32)

    kern = functools.partial(_fused_performer_kernel, heads=heads, eps=eps)
    return pl.pallas_call(
        kern,
        out_shape=jax.ShapeDtypeStruct((B, N, dim), f32),
        grid=(B,),
        in_specs=[
            pl.BlockSpec((1, N, dim), lambda b: (b, 0, 0)),
            pl.BlockSpec((dim, 3 * inner), lambda b: (0, 0)),
            pl.BlockSpec((inner, heads * M), lambda b: (0, 0)),
            pl.BlockSpec((inner, dim), lambda b: (0, 0)),
            pl.BlockSpec((1, dim), lambda b: (0, 0)),
        ],
        out_specs=pl.BlockSpec((1, N, dim), lambda b: (b, 0, 0)),
        compiler_params=pltpu.CompilerParams(dimension_semantics=("parallel",)),
    )(x.astype(f32), wqkv, proj_bd, wo_t, bo)


# ----------------------------------------------------------------------------
# Parameter setup (deterministic, synthetic)
# ----------------------------------------------------------------------------
def gaussian_orthogonal_random_matrix(key, nb_rows, nb_cols, scaling=0):
    nb_full_blocks = nb_rows // nb_cols
    keys = jax.random.split(key, nb_full_blocks + 2)
    blocks = []
    for i in range(nb_full_blocks):
        g = jax.random.normal(keys[i], (nb_cols, nb_cols), jnp.float32)
        qm, _ = jnp.linalg.qr(g)
        blocks.append(qm.T)
    rem = nb_rows - nb_full_blocks * nb_cols
    if rem > 0:
        g = jax.random.normal(keys[-2], (nb_cols, nb_cols), jnp.float32)
        qm, _ = jnp.linalg.qr(g)
        blocks.append(qm.T[:rem])
    mat = jnp.concatenate(blocks, axis=0)
    if scaling == 0:
        multiplier = jnp.linalg.norm(
            jax.random.normal(keys[-1], (nb_rows, nb_cols), jnp.float32), axis=1
        )
    else:
        multiplier = jnp.full((nb_rows,), math.sqrt(float(nb_cols)), jnp.float32)
    return multiplier[:, None] * mat


def init_params(key, dim, heads, dim_head, nb_features):
    inner = heads * dim_head
    k1, k2, k3, k4, k5, k6 = jax.random.split(key, 6)

    def lin_w(k, fan_in, fan_out):
        bound = 1.0 / math.sqrt(fan_in)
        return jax.random.uniform(k, (fan_out, fan_in), jnp.float32, -bound, bound)

    bo_bound = 1.0 / math.sqrt(inner)
    return dict(
        wq=lin_w(k1, dim, inner),          # to_q (no bias, qkv_bias=False)
        wk=lin_w(k2, dim, inner),          # to_k
        wv=lin_w(k3, dim, inner),          # to_v
        wo=lin_w(k4, inner, dim),          # to_out weight
        bo=jax.random.uniform(k5, (dim,), jnp.float32, -bo_bound, bo_bound),
        proj=gaussian_orthogonal_random_matrix(k6, nb_features, dim_head),
    )


# ----------------------------------------------------------------------------
# Pure-JAX reference (numerical sanity check only)
# ----------------------------------------------------------------------------
def reference_forward(x, params, heads):
    B, N, dim = x.shape
    inner = params["wq"].shape[0]
    dh = inner // heads
    q = x @ params["wq"].T
    k = x @ params["wk"].T
    v = x @ params["wv"].T

    def to_heads(t):
        return t.reshape(B, N, heads, dh).transpose(0, 2, 1, 3)

    q, k, v = map(to_heads, (q, k, v))
    proj = params["proj"]
    d_norm = dh ** -0.25
    ratio = proj.shape[0] ** -0.5
    eps = 1e-4
    q_dash = jnp.einsum("bhnd,md->bhnm", q * d_norm, proj)
    k_dash = jnp.einsum("bhnd,md->bhnm", k * d_norm, proj)
    diag_q = 0.5 * d_norm ** 2 * jnp.sum(q * q, -1, keepdims=True)
    diag_k = 0.5 * d_norm ** 2 * jnp.sum(k * k, -1, keepdims=True)
    qp = ratio * (jnp.exp(q_dash - diag_q - jnp.max(q_dash, -1, keepdims=True)) + eps)
    kp = ratio * (
        jnp.exp(k_dash - diag_k - jnp.max(k_dash, axis=(1, 2, 3), keepdims=True)) + eps
    )
    k_cumsum = kp.sum(-2)
    d_inv = 1.0 / jnp.einsum("bhnm,bhm->bhn", qp, k_cumsum)
    context = jnp.einsum("bhnm,bhnd->bhmd", kp, v)
    out = jnp.einsum("bhnm,bhmd->bhnd", qp, context) * d_inv[..., None]
    out = out.transpose(0, 2, 1, 3).reshape(B, N, inner)
    return out @ params["wo"].T + params["bo"]


if __name__ == "__main__":
    B, N, DIM, HEADS = 2, 16, 32, 4
    DIM_HEAD = DIM // HEADS                              # 8
    NB_FEATURES = int(DIM_HEAD * math.log(DIM_HEAD))     # 16 (Performer default)

    key = jax.random.PRNGKey(0)
    kx, kp = jax.random.split(key)
    x = jax.random.normal(kx, (B, N, DIM), jnp.float32)
    params = init_params(kp, DIM, HEADS, DIM_HEAD, NB_FEATURES)

    out = self_attention_forward(x, params, HEADS)
    out = jax.block_until_ready(out)

    ref = reference_forward(x, params, HEADS)
    assert out.shape == (B, N, DIM)
    # tolerance leaves headroom for pl.reciprocal(approx=True); real logic bugs are >> 1e-2
    err = float(jnp.max(jnp.abs(out - ref)))
    assert err < 2e-3, f"max abs err {err}"
    print("KERNEL_OK")
</pallas_src>

<mosaic_0001>
module attributes {stable_mosaic.version = 11 : i64} {
  func.func @_fused_performer_kernel(%arg0: i32, %arg1: memref<1x16x32xf32, #tpu.memory_space<vmem>>, %arg2: memref<32x96xf32, #tpu.memory_space<vmem>>, %arg3: memref<32x64xf32, #tpu.memory_space<vmem>>, %arg4: memref<32x32xf32, #tpu.memory_space<vmem>>, %arg5: memref<1x32xf32, #tpu.memory_space<vmem>>, %arg6: memref<1x16x32xf32, #tpu.memory_space<vmem>>) attributes {dimension_semantics = [#tpu.dimension_semantics<parallel>], iteration_bounds = array<i64: 2>, scalar_prefetch = 0 : i64, scratch_operands = 0 : i64, tpu.core_type = #tpu.core_type<tc>, window_params = [{transform_indices = @transform_0, window_bounds = array<i64: 1, 16, 32>}, {pipeline_mode = #tpu.pipeline_mode<synchronous>, transform_indices = @transform_1, window_bounds = array<i64: 32, 96>}, {pipeline_mode = #tpu.pipeline_mode<synchronous>, transform_indices = @transform_2, window_bounds = array<i64: 32, 64>}, {pipeline_mode = #tpu.pipeline_mode<synchronous>, transform_indices = @transform_3, window_bounds = array<i64: 32, 32>}, {pipeline_mode = #tpu.pipeline_mode<synchronous>, transform_indices = @transform_4, window_bounds = array<i64: 1, 32>}, {transform_indices = @transform_5, window_bounds = array<i64: 1, 16, 32>}]} {
    %c0 = arith.constant 0 : index
    %c0_0 = arith.constant 0 : index
    %c0_1 = arith.constant 0 : index
    %0 = vector.load %arg1[%c0, %c0_0, %c0_1] : memref<1x16x32xf32, #tpu.memory_space<vmem>>, vector<1x16x32xf32>
    %1 = vector.shape_cast %0 : vector<1x16x32xf32> to vector<16x32xf32>
    %c0_2 = arith.constant 0 : index
    %c0_3 = arith.constant 0 : index
    %2 = vector.load %arg2[%c0_2, %c0_3] : memref<32x96xf32, #tpu.memory_space<vmem>>, vector<32x96xf32>
    %cst = arith.constant dense<0.000000e+00> : vector<16x96xf32>
    %3 = tpu.matmul %1, %2, %cst {dimension_numbers = #tpu.dot_dimension_numbers<[1], [0], [0], [1], [0, 0, 1, 1], [], []>} : vector<16x32xf32>, vector<32x96xf32>, vector<16x96xf32> -> vector<16x96xf32>
    %4 = vector.extract_strided_slice %3 {offsets = [0, 0], sizes = [16, 32], strides = [1, 1]} : vector<16x96xf32> to vector<16x32xf32>
    %cst_4 = arith.constant 0.594603539 : f32
    %5 = vector.broadcast %cst_4 : f32 to vector<16x32xf32>
    %6 = arith.mulf %4, %5 : vector<16x32xf32>
    %7 = vector.extract_strided_slice %3 {offsets = [0, 32], sizes = [16, 32], strides = [1, 1]} : vector<16x96xf32> to vector<16x32xf32>
    %cst_5 = arith.constant 0.594603539 : f32
    %8 = vector.broadcast %cst_5 : f32 to vector<16x32xf32>
    %9 = arith.mulf %7, %8 : vector<16x32xf32>
    %10 = vector.extract_strided_slice %3 {offsets = [0, 64], sizes = [16, 32], strides = [1, 1]} : vector<16x96xf32> to vector<16x32xf32>
    %c0_6 = arith.constant 0 : index
    %c0_7 = arith.constant 0 : index
    %11 = vector.load %arg3[%c0_6, %c0_7] : memref<32x64xf32, #tpu.memory_space<vmem>>, vector<32x64xf32>
    %cst_8 = arith.constant dense<0.000000e+00> : vector<16x64xf32>
    %12 = tpu.matmul %6, %11, %cst_8 {dimension_numbers = #tpu.dot_dimension_numbers<[1], [0], [0], [1], [0, 0, 1, 1], [], []>} : vector<16x32xf32>, vector<32x64xf32>, vector<16x64xf32> -> vector<16x64xf32>
    %c0_9 = arith.constant 0 : index
    %c0_10 = arith.constant 0 : index
    %13 = vector.load %arg3[%c0_9, %c0_10] : memref<32x64xf32, #tpu.memory_space<vmem>>, vector<32x64xf32>
    %cst_11 = arith.constant dense<0.000000e+00> : vector<16x64xf32>
    %14 = tpu.matmul %9, %13, %cst_11 {dimension_numbers = #tpu.dot_dimension_numbers<[1], [0], [0], [1], [0, 0, 1, 1], [], []>} : vector<16x32xf32>, vector<32x64xf32>, vector<16x64xf32> -> vector<16x64xf32>
    %15 = vector.shape_cast %14 : vector<16x64xf32> to vector<1x16x64xf32>
    %cst_12 = arith.constant dense<0xFF800000> : vector<1xf32>
    %16 = vector.multi_reduction <maximumf>, %15, %cst_12 [1, 2] : vector<1x16x64xf32> to vector<1xf32>
    %17 = vector.shape_cast %16 : vector<1xf32> to vector<1x1x1xf32>
    %18 = vector.extract %17[0, 0, 0] : f32 from vector<1x1x1xf32>
    %c0_13 = arith.constant 0 : index
    %c0_14 = arith.constant 0 : index
    %19 = vector.load %arg4[%c0_13, %c0_14] : memref<32x32xf32, #tpu.memory_space<vmem>>, vector<32x32xf32>
    %cst_15 = arith.constant 0.000000e+00 : f32
    %20 = vector.broadcast %cst_15 : f32 to vector<16x32xf32>
    %21 = vector.extract_strided_slice %6 {offsets = [0, 0], sizes = [16, 8], strides = [1, 1]} : vector<16x32xf32> to vector<16x8xf32>
    %22 = vector.extract_strided_slice %9 {offsets = [0, 0], sizes = [16, 8], strides = [1, 1]} : vector<16x32xf32> to vector<16x8xf32>
    %23 = vector.extract_strided_slice %10 {offsets = [0, 0], sizes = [16, 8], strides = [1, 1]} : vector<16x32xf32> to vector<16x8xf32>
    %24 = vector.extract_strided_slice %12 {offsets = [0, 0], sizes = [16, 16], strides = [1, 1]} : vector<16x64xf32> to vector<16x16xf32>
    %25 = vector.extract_strided_slice %14 {offsets = [0, 0], sizes = [16, 16], strides = [1, 1]} : vector<16x64xf32> to vector<16x16xf32>
    %26 = arith.mulf %21, %21 : vector<16x8xf32>
    %cst_16 = arith.constant dense<0.000000e+00> : vector<16xf32>
    %27 = vector.multi_reduction <add>, %26, %cst_16 [1] : vector<16x8xf32> to vector<16xf32>
    %28 = vector.shape_cast %27 : vector<16xf32> to vector<16x1xf32>
    %cst_17 = arith.constant 5.000000e-01 : f32
    %29 = vector.broadcast %cst_17 : f32 to vector<16x1xf32>
    %30 = arith.mulf %29, %28 : vector<16x1xf32>
    %31 = arith.mulf %22, %22 : vector<16x8xf32>
    %cst_18 = arith.constant dense<0.000000e+00> : vector<16xf32>
    %32 = vector.multi_reduction <add>, %31, %cst_18 [1] : vector<16x8xf32> to vector<16xf32>
    %33 = vector.shape_cast %32 : vector<16xf32> to vector<16x1xf32>
    %cst_19 = arith.constant 5.000000e-01 : f32
    %34 = vector.broadcast %cst_19 : f32 to vector<16x1xf32>
    %35 = arith.mulf %34, %33 : vector<16x1xf32>
    %36 = vector.broadcast %30 : vector<16x1xf32> to vector<16x16xf32>
    %37 = arith.subf %24, %36 : vector<16x16xf32>
    %cst_20 = arith.constant dense<0xFF800000> : vector<16xf32>
    %38 = vector.multi_reduction <maximumf>, %24, %cst_20 [1] : vector<16x16xf32> to vector<16xf32>
    %39 = vector.shape_cast %38 : vector<16xf32> to vector<16x1xf32>
    %40 = vector.broadcast %39 : vector<16x1xf32> to vector<16x16xf32>
    %41 = arith.subf %37, %40 : vector<16x16xf32>
    %42 = math.exp %41 : vector<16x16xf32>
    %cst_21 = arith.constant 9.99999974E-5 : f32
    %43 = vector.broadcast %cst_21 : f32 to vector<16x16xf32>
    %44 = arith.addf %42, %43 : vector<16x16xf32>
    %cst_22 = arith.constant 2.500000e-01 : f32
    %45 = vector.broadcast %cst_22 : f32 to vector<16x16xf32>
    %46 = arith.mulf %45, %44 : vector<16x16xf32>
    %47 = vector.broadcast %35 : vector<16x1xf32> to vector<16x16xf32>
    %48 = arith.subf %25, %47 : vector<16x16xf32>
    %49 = vector.broadcast %18 : f32 to vector<16x16xf32>
    %50 = arith.subf %48, %49 : vector<16x16xf32>
    %51 = math.exp %50 : vector<16x16xf32>
    %cst_23 = arith.constant 9.99999974E-5 : f32
    %52 = vector.broadcast %cst_23 : f32 to vector<16x16xf32>
    %53 = arith.addf %51, %52 : vector<16x16xf32>
    %cst_24 = arith.constant 2.500000e-01 : f32
    %54 = vector.broadcast %cst_24 : f32 to vector<16x16xf32>
    %55 = arith.mulf %54, %53 : vector<16x16xf32>
    %cst_25 = arith.constant dense<0.000000e+00> : vector<16x8xf32>
    %56 = tpu.matmul %55, %23, %cst_25 {dimension_numbers = #tpu.dot_dimension_numbers<[0], [0], [1], [1], [0, 1, 1, 1], [], []>} : vector<16x16xf32>, vector<16x8xf32>, vector<16x8xf32> -> vector<16x8xf32>
    %cst_26 = arith.constant dense<0.000000e+00> : vector<16xf32>
    %57 = vector.multi_reduction <add>, %55, %cst_26 [0] : vector<16x16xf32> to vector<16xf32>
    %58 = vector.shape_cast %57 : vector<16xf32> to vector<1x16xf32>
    %59 = vector.broadcast %58 : vector<1x16xf32> to vector<16x16xf32>
    %60 = arith.mulf %46, %59 : vector<16x16xf32>
    %cst_27 = arith.constant dense<0.000000e+00> : vector<16xf32>
    %61 = vector.multi_reduction <add>, %60, %cst_27 [1] : vector<16x16xf32> to vector<16xf32>
    %62 = vector.shape_cast %61 : vector<16xf32> to vector<16x1xf32>
    %cst_28 = arith.constant dense<0.000000e+00> : vector<16x8xf32>
    %63 = tpu.matmul %46, %56, %cst_28 {dimension_numbers = #tpu.dot_dimension_numbers<[1], [0], [0], [1], [0, 0, 1, 1], [], []>} : vector<16x16xf32>, vector<16x8xf32>, vector<16x8xf32> -> vector<16x8xf32>
    %64 = tpu.reciprocal %62 {approx = true} : vector<16x1xf32> -> vector<16x1xf32>
    %65 = vector.broadcast %64 : vector<16x1xf32> to vector<16x8xf32>
    %66 = arith.mulf %63, %65 : vector<16x8xf32>
    %67 = vector.extract_strided_slice %19 {offsets = [0, 0], sizes = [8, 32], strides = [1, 1]} : vector<32x32xf32> to vector<8x32xf32>
    %cst_29 = arith.constant dense<0.000000e+00> : vector<16x32xf32>
    %68 = tpu.matmul %66, %67, %cst_29 {dimension_numbers = #tpu.dot_dimension_numbers<[1], [0], [0], [1], [0, 0, 1, 1], [], []>} : vector<16x8xf32>, vector<8x32xf32>, vector<16x32xf32> -> vector<16x32xf32>
    %69 = arith.addf %20, %68 : vector<16x32xf32>
    %70 = vector.extract_strided_slice %6 {offsets = [0, 8], sizes = [16, 8], strides = [1, 1]} : vector<16x32xf32> to vector<16x8xf32>
    %71 = vector.extract_strided_slice %9 {offsets = [0, 8], sizes = [16, 8], strides = [1, 1]} : vector<16x32xf32> to vector<16x8xf32>
    %72 = vector.extract_strided_slice %10 {offsets = [0, 8], sizes = [16, 8], strides = [1, 1]} : vector<16x32xf32> to vector<16x8xf32>
    %73 = vector.extract_strided_slice %12 {offsets = [0, 16], sizes = [16, 16], strides = [1, 1]} : vector<16x64xf32> to vector<16x16xf32>
    %74 = vector.extract_strided_slice %14 {offsets = [0, 16], sizes = [16, 16], strides = [1, 1]} : vector<16x64xf32> to vector<16x16xf32>
    %75 = arith.mulf %70, %70 : vector<16x8xf32>
    %cst_30 = arith.constant dense<0.000000e+00> : vector<16xf32>
    %76 = vector.multi_reduction <add>, %75, %cst_30 [1] : vector<16x8xf32> to vector<16xf32>
    %77 = vector.shape_cast %76 : vector<16xf32> to vector<16x1xf32>
    %cst_31 = arith.constant 5.000000e-01 : f32
    %78 = vector.broadcast %cst_31 : f32 to vector<16x1xf32>
    %79 = arith.mulf %78, %77 : vector<16x1xf32>
    %80 = arith.mulf %71, %71 : vector<16x8xf32>
    %cst_32 = arith.constant dense<0.000000e+00> : vector<16xf32>
    %81 = vector.multi_reduction <add>, %80, %cst_32 [1] : vector<16x8xf32> to vector<16xf32>
    %82 = vector.shape_cast %81 : vector<16xf32> to vector<16x1xf32>
    %cst_33 = arith.constant 5.000000e-01 : f32
    %83 = vector.broadcast %cst_33 : f32 to vector<16x1xf32>
    %84 = arith.mulf %83, %82 : vector<16x1xf32>
    %85 = vector.broadcast %79 : vector<16x1xf32> to vector<16x16xf32>
    %86 = arith.subf %73, %85 : vector<16x16xf32>
    %cst_34 = arith.constant dense<0xFF800000> : vector<16xf32>
    %87 = vector.multi_reduction <maximumf>, %73, %cst_34 [1] : vector<16x16xf32> to vector<16xf32>
    %88 = vector.shape_cast %87 : vector<16xf32> to vector<16x1xf32>
    %89 = vector.broadcast %88 : vector<16x1xf32> to vector<16x16xf32>
    %90 = arith.subf %86, %89 : vector<16x16xf32>
    %91 = math.exp %90 : vector<16x16xf32>
    %cst_35 = arith.constant 9.99999974E-5 : f32
    %92 = vector.broadcast %cst_35 : f32 to vector<16x16xf32>
    %93 = arith.addf %91, %92 : vector<16x16xf32>
    %cst_36 = arith.constant 2.500000e-01 : f32
    %94 = vector.broadcast %cst_36 : f32 to vector<16x16xf32>
    %95 = arith.mulf %94, %93 : vector<16x16xf32>
    %96 = vector.broadcast %84 : vector<16x1xf32> to vector<16x16xf32>
    %97 = arith.subf %74, %96 : vector<16x16xf32>
    %98 = vector.broadcast %18 : f32 to vector<16x16xf32>
    %99 = arith.subf %97, %98 : vector<16x16xf32>
    %100 = math.exp %99 : vector<16x16xf32>
    %cst_37 = arith.constant 9.99999974E-5 : f32
    %101 = vector.broadcast %cst_37 : f32 to vector<16x16xf32>
    %102 = arith.addf %100, %101 : vector<16x16xf32>
    %cst_38 = arith.constant 2.500000e-01 : f32
    %103 = vector.broadcast %cst_38 : f32 to vector<16x16xf32>
    %104 = arith.mulf %103, %102 : vector<16x16xf32>
    %cst_39 = arith.constant dense<0.000000e+00> : vector<16x8xf32>
    %105 = tpu.matmul %104, %72, %cst_39 {dimension_numbers = #tpu.dot_dimension_numbers<[0], [0], [1], [1], [0, 1, 1, 1], [], []>} : vector<16x16xf32>, vector<16x8xf32>, vector<16x8xf32> -> vector<16x8xf32>
    %cst_40 = arith.constant dense<0.000000e+00> : vector<16xf32>
    %106 = vector.multi_reduction <add>, %104, %cst_40 [0] : vector<16x16xf32> to vector<16xf32>
    %107 = vector.shape_cast %106 : vector<16xf32> to vector<1x16xf32>
    %108 = vector.broadcast %107 : vector<1x16xf32> to vector<16x16xf32>
    %109 = arith.mulf %95, %108 : vector<16x16xf32>
    %cst_41 = arith.constant dense<0.000000e+00> : vector<16xf32>
    %110 = vector.multi_reduction <add>, %109, %cst_41 [1] : vector<16x16xf32> to vector<16xf32>
    %111 = vector.shape_cast %110 : vector<16xf32> to vector<16x1xf32>
    %cst_42 = arith.constant dense<0.000000e+00> : vector<16x8xf32>
    %112 = tpu.matmul %95, %105, %cst_42 {dimension_numbers = #tpu.dot_dimension_numbers<[1], [0], [0], [1], [0, 0, 1, 1], [], []>} : vector<16x16xf32>, vector<16x8xf32>, vector<16x8xf32> -> vector<16x8xf32>
    %113 = tpu.reciprocal %111 {approx = true} : vector<16x1xf32> -> vector<16x1xf32>
    %114 = vector.broadcast %113 : vector<16x1xf32> to vector<16x8xf32>
    %115 = arith.mulf %112, %114 : vector<16x8xf32>
    %116 = vector.extract_strided_slice %19 {offsets = [8, 0], sizes = [8, 32], strides = [1, 1]} : vector<32x32xf32> to vector<8x32xf32>
    %cst_43 = arith.constant dense<0.000000e+00> : vector<16x32xf32>
    %117 = tpu.matmul %115, %116, %cst_43 {dimension_numbers = #tpu.dot_dimension_numbers<[1], [0], [0], [1], [0, 0, 1, 1], [], []>} : vector<16x8xf32>, vector<8x32xf32>, vector<16x32xf32> -> vector<16x32xf32>
    %118 = arith.addf %69, %117 : vector<16x32xf32>
    %119 = vector.extract_strided_slice %6 {offsets = [0, 16], sizes = [16, 8], strides = [1, 1]} : vector<16x32xf32> to vector<16x8xf32>
    %120 = vector.extract_strided_slice %9 {offsets = [0, 16], sizes = [16, 8], strides = [1, 1]} : vector<16x32xf32> to vector<16x8xf32>
    %121 = vector.extract_strided_slice %10 {offsets = [0, 16], sizes = [16, 8], strides = [1, 1]} : vector<16x32xf32> to vector<16x8xf32>
    %122 = vector.extract_strided_slice %12 {offsets = [0, 32], sizes = [16, 16], strides = [1, 1]} : vector<16x64xf32> to vector<16x16xf32>
    %123 = vector.extract_strided_slice %14 {offsets = [0, 32], sizes = [16, 16], strides = [1, 1]} : vector<16x64xf32> to vector<16x16xf32>
    %124 = arith.mulf %119, %119 : vector<16x8xf32>
    %cst_44 = arith.constant dense<0.000000e+00> : vector<16xf32>
    %125 = vector.multi_reduction <add>, %124, %cst_44 [1] : vector<16x8xf32> to vector<16xf32>
    %126 = vector.shape_cast %125 : vector<16xf32> to vector<16x1xf32>
    %cst_45 = arith.constant 5.000000e-01 : f32
    %127 = vector.broadcast %cst_45 : f32 to vector<16x1xf32>
    %128 = arith.mulf %127, %126 : vector<16x1xf32>
    %129 = arith.mulf %120, %120 : vector<16x8xf32>
    %cst_46 = arith.constant dense<0.000000e+00> : vector<16xf32>
    %130 = vector.multi_reduction <add>, %129, %cst_46 [1] : vector<16x8xf32> to vector<16xf32>
    %131 = vector.shape_cast %130 : vector<16xf32> to vector<16x1xf32>
    %cst_47 = arith.constant 5.000000e-01 : f32
    %132 = vector.broadcast %cst_47 : f32 to vector<16x1xf32>
    %133 = arith.mulf %132, %131 : vector<16x1xf32>
    %134 = vector.broadcast %128 : vector<16x1xf32> to vector<16x16xf32>
    %135 = arith.subf %122, %134 : vector<16x16xf32>
    %cst_48 = arith.constant dense<0xFF800000> : vector<16xf32>
    %136 = vector.multi_reduction <maximumf>, %122, %cst_48 [1] : vector<16x16xf32> to vector<16xf32>
    %137 = vector.shape_cast %136 : vector<16xf32> to vector<16x1xf32>
    %138 = vector.broadcast %137 : vector<16x1xf32> to vector<16x16xf32>
    %139 = arith.subf %135, %138 : vector<16x16xf32>
    %140 = math.exp %139 : vector<16x16xf32>
    %cst_49 = arith.constant 9.99999974E-5 : f32
    %141 = vector.broadcast %cst_49 : f32 to vector<16x16xf32>
    %142 = arith.addf %140, %141 : vector<16x16xf32>
    %cst_50 = arith.constant 2.500000e-01 : f32
    %143 = vector.broadcast %cst_50 : f32 to vector<16x16xf32>
    %144 = arith.mulf %143, %142 : vector<16x16xf32>
    %145 = vector.broadcast %133 : vector<16x1xf32> to vector<16x16xf32>
    %146 = arith.subf %123, %145 : vector<16x16xf32>
    %147 = vector.broadcast %18 : f32 to vector<16x16xf32>
    %148 = arith.subf %146, %147 : vector<16x16xf32>
    %149 = math.exp %148 : vector<16x16xf32>
    %cst_51 = arith.constant 9.99999974E-5 : f32
    %150 = vector.broadcast %cst_51 : f32 to vector<16x16xf32>
    %151 = arith.addf %149, %150 : vector<16x16xf32>
    %cst_52 = arith.constant 2.500000e-01 : f32
    %152 = vector.broadcast %cst_52 : f32 to vector<16x16xf32>
    %153 = arith.mulf %152, %151 : vector<16x16xf32>
    %cst_53 = arith.constant dense<0.000000e+00> : vector<16x8xf32>
    %154 = tpu.matmul %153, %121, %cst_53 {dimension_numbers = #tpu.dot_dimension_numbers<[0], [0], [1], [1], [0, 1, 1, 1], [], []>} : vector<16x16xf32>, vector<16x8xf32>, vector<16x8xf32> -> vector<16x8xf32>
    %cst_54 = arith.constant dense<0.000000e+00> : vector<16xf32>
    %155 = vector.multi_reduction <add>, %153, %cst_54 [0] : vector<16x16xf32> to vector<16xf32>
    %156 = vector.shape_cast %155 : vector<16xf32> to vector<1x16xf32>
    %157 = vector.broadcast %156 : vector<1x16xf32> to vector<16x16xf32>
    %158 = arith.mulf %144, %157 : vector<16x16xf32>
    %cst_55 = arith.constant dense<0.000000e+00> : vector<16xf32>
    %159 = vector.multi_reduction <add>, %158, %cst_55 [1] : vector<16x16xf32> to vector<16xf32>
    %160 = vector.shape_cast %159 : vector<16xf32> to vector<16x1xf32>
    %cst_56 = arith.constant dense<0.000000e+00> : vector<16x8xf32>
    %161 = tpu.matmul %144, %154, %cst_56 {dimension_numbers = #tpu.dot_dimension_numbers<[1], [0], [0], [1], [0, 0, 1, 1], [], []>} : vector<16x16xf32>, vector<16x8xf32>, vector<16x8xf32> -> vector<16x8xf32>
    %162 = tpu.reciprocal %160 {approx = true} : vector<16x1xf32> -> vector<16x1xf32>
    %163 = vector.broadcast %162 : vector<16x1xf32> to vector<16x8xf32>
    %164 = arith.mulf %161, %163 : vector<16x8xf32>
    %165 = vector.extract_strided_slice %19 {offsets = [16, 0], sizes = [8, 32], strides = [1, 1]} : vector<32x32xf32> to vector<8x32xf32>
    %cst_57 = arith.constant dense<0.000000e+00> : vector<16x32xf32>
    %166 = tpu.matmul %164, %165, %cst_57 {dimension_numbers = #tpu.dot_dimension_numbers<[1], [0], [0], [1], [0, 0, 1, 1], [], []>} : vector<16x8xf32>, vector<8x32xf32>, vector<16x32xf32> -> vector<16x32xf32>
    %167 = arith.addf %118, %166 : vector<16x32xf32>
    %168 = vector.extract_strided_slice %6 {offsets = [0, 24], sizes = [16, 8], strides = [1, 1]} : vector<16x32xf32> to vector<16x8xf32>
    %169 = vector.extract_strided_slice %9 {offsets = [0, 24], sizes = [16, 8], strides = [1, 1]} : vector<16x32xf32> to vector<16x8xf32>
    %170 = vector.extract_strided_slice %10 {offsets = [0, 24], sizes = [16, 8], strides = [1, 1]} : vector<16x32xf32> to vector<16x8xf32>
    %171 = vector.extract_strided_slice %12 {offsets = [0, 48], sizes = [16, 16], strides = [1, 1]} : vector<16x64xf32> to vector<16x16xf32>
    %172 = vector.extract_strided_slice %14 {offsets = [0, 48], sizes = [16, 16], strides = [1, 1]} : vector<16x64xf32> to vector<16x16xf32>
    %173 = arith.mulf %168, %168 : vector<16x8xf32>
    %cst_58 = arith.constant dense<0.000000e+00> : vector<16xf32>
    %174 = vector.multi_reduction <add>, %173, %cst_58 [1] : vector<16x8xf32> to vector<16xf32>
    %175 = vector.shape_cast %174 : vector<16xf32> to vector<16x1xf32>
    %cst_59 = arith.constant 5.000000e-01 : f32
    %176 = vector.broadcast %cst_59 : f32 to vector<16x1xf32>
    %177 = arith.mulf %176, %175 : vector<16x1xf32>
    %178 = arith.mulf %169, %169 : vector<16x8xf32>
    %cst_60 = arith.constant dense<0.000000e+00> : vector<16xf32>
    %179 = vector.multi_reduction <add>, %178, %cst_60 [1] : vector<16x8xf32> to vector<16xf32>
    %180 = vector.shape_cast %179 : vector<16xf32> to vector<16x1xf32>
    %cst_61 = arith.constant 5.000000e-01 : f32
    %181 = vector.broadcast %cst_61 : f32 to vector<16x1xf32>
    %182 = arith.mulf %181, %180 : vector<16x1xf32>
    %183 = vector.broadcast %177 : vector<16x1xf32> to vector<16x16xf32>
    %184 = arith.subf %171, %183 : vector<16x16xf32>
    %cst_62 = arith.constant dense<0xFF800000> : vector<16xf32>
    %185 = vector.multi_reduction <maximumf>, %171, %cst_62 [1] : vector<16x16xf32> to vector<16xf32>
    %186 = vector.shape_cast %185 : vector<16xf32> to vector<16x1xf32>
    %187 = vector.broadcast %186 : vector<16x1xf32> to vector<16x16xf32>
    %188 = arith.subf %184, %187 : vector<16x16xf32>
    %189 = math.exp %188 : vector<16x16xf32>
    %cst_63 = arith.constant 9.99999974E-5 : f32
    %190 = vector.broadcast %cst_63 : f32 to vector<16x16xf32>
    %191 = arith.addf %189, %190 : vector<16x16xf32>
    %cst_64 = arith.constant 2.500000e-01 : f32
    %192 = vector.broadcast %cst_64 : f32 to vector<16x16xf32>
    %193 = arith.mulf %192, %191 : vector<16x16xf32>
    %194 = vector.broadcast %182 : vector<16x1xf32> to vector<16x16xf32>
    %195 = arith.subf %172, %194 : vector<16x16xf32>
    %196 = vector.broadcast %18 : f32 to vector<16x16xf32>
    %197 = arith.subf %195, %196 : vector<16x16xf32>
    %198 = math.exp %197 : vector<16x16xf32>
    %cst_65 = arith.constant 9.99999974E-5 : f32
    %199 = vector.broadcast %cst_65 : f32 to vector<16x16xf32>
    %200 = arith.addf %198, %199 : vector<16x16xf32>
    %cst_66 = arith.constant 2.500000e-01 : f32
    %201 = vector.broadcast %cst_66 : f32 to vector<16x16xf32>
    %202 = arith.mulf %201, %200 : vector<16x16xf32>
    %cst_67 = arith.constant dense<0.000000e+00> : vector<16x8xf32>
    %203 = tpu.matmul %202, %170, %cst_67 {dimension_numbers = #tpu.dot_dimension_numbers<[0], [0], [1], [1], [0, 1, 1, 1], [], []>} : vector<16x16xf32>, vector<16x8xf32>, vector<16x8xf32> -> vector<16x8xf32>
    %cst_68 = arith.constant dense<0.000000e+00> : vector<16xf32>
    %204 = vector.multi_reduction <add>, %202, %cst_68 [0] : vector<16x16xf32> to vector<16xf32>
    %205 = vector.shape_cast %204 : vector<16xf32> to vector<1x16xf32>
    %206 = vector.broadcast %205 : vector<1x16xf32> to vector<16x16xf32>
    %207 = arith.mulf %193, %206 : vector<16x16xf32>
    %cst_69 = arith.constant dense<0.000000e+00> : vector<16xf32>
    %208 = vector.multi_reduction <add>, %207, %cst_69 [1] : vector<16x16xf32> to vector<16xf32>
    %209 = vector.shape_cast %208 : vector<16xf32> to vector<16x1xf32>
    %cst_70 = arith.constant dense<0.000000e+00> : vector<16x8xf32>
    %210 = tpu.matmul %193, %203, %cst_70 {dimension_numbers = #tpu.dot_dimension_numbers<[1], [0], [0], [1], [0, 0, 1, 1], [], []>} : vector<16x16xf32>, vector<16x8xf32>, vector<16x8xf32> -> vector<16x8xf32>
    %211 = tpu.reciprocal %209 {approx = true} : vector<16x1xf32> -> vector<16x1xf32>
    %212 = vector.broadcast %211 : vector<16x1xf32> to vector<16x8xf32>
    %213 = arith.mulf %210, %212 : vector<16x8xf32>
    %214 = vector.extract_strided_slice %19 {offsets = [24, 0], sizes = [8, 32], strides = [1, 1]} : vector<32x32xf32> to vector<8x32xf32>
    %cst_71 = arith.constant dense<0.000000e+00> : vector<16x32xf32>
    %215 = tpu.matmul %213, %214, %cst_71 {dimension_numbers = #tpu.dot_dimension_numbers<[1], [0], [0], [1], [0, 0, 1, 1], [], []>} : vector<16x8xf32>, vector<8x32xf32>, vector<16x32xf32> -> vector<16x32xf32>
    %216 = arith.addf %167, %215 : vector<16x32xf32>
    %c0_72 = arith.constant 0 : index
    %c0_73 = arith.constant 0 : index
    %217 = vector.load %arg5[%c0_72, %c0_73] : memref<1x32xf32, #tpu.memory_space<vmem>>, vector<1x32xf32>
    %218 = vector.broadcast %217 : vector<1x32xf32> to vector<16x32xf32>
    %219 = arith.addf %216, %218 : vector<16x32xf32>
    %c0_74 = arith.constant 0 : index
    %c0_75 = arith.constant 0 : index
    %c0_76 = arith.constant 0 : index
    %220 = vector.load %arg6[%c0_74, %c0_75, %c0_76] : memref<1x16x32xf32, #tpu.memory_space<vmem>>, vector<1x16x32xf32>
    %221 = vector.shape_cast %220 : vector<1x16x32xf32> to vector<16x32xf32>
    %222 = vector.shape_cast %219 : vector<16x32xf32> to vector<1x16x32xf32>
    tpu.vector_store %arg6[%c0_74, %c0_75, %c0_76], %222 {strides = array<i32>} : memref<1x16x32xf32, #tpu.memory_space<vmem>>, vector<1x16x32xf32>,
    return
  }
  func.func @transform_0(%arg0: i32) -> (i32, i32, i32) {
    %c0_i32 = arith.constant 0 : i32
    %c0_i32_0 = arith.constant 0 : i32
    %c0_i32_1 = arith.constant 0 : i32
    return %arg0, %c0_i32, %c0_i32_0 : i32, i32, i32
  }
  func.func @transform_1(%arg0: i32) -> (i32, i32) {
    %c0_i32 = arith.constant 0 : i32
    %c0_i32_0 = arith.constant 0 : i32
    %c0_i32_1 = arith.constant 0 : i32
    return %c0_i32, %c0_i32_0 : i32, i32
  }
  func.func @transform_2(%arg0: i32) -> (i32, i32) {
    %c0_i32 = arith.constant 0 : i32
    %c0_i32_0 = arith.constant 0 : i32
    %c0_i32_1 = arith.constant 0 : i32
    return %c0_i32, %c0_i32_0 : i32, i32
  }
  func.func @transform_3(%arg0: i32) -> (i32, i32) {
    %c0_i32 = arith.constant 0 : i32
    %c0_i32_0 = arith.constant 0 : i32
    %c0_i32_1 = arith.constant 0 : i32
    return %c0_i32, %c0_i32_0 : i32, i32
  }
  func.func @transform_4(%arg0: i32) -> (i32, i32) {
    %c0_i32 = arith.constant 0 : i32
    %c0_i32_0 = arith.constant 0 : i32
    %c0_i32_1 = arith.constant 0 : i32
    return %c0_i32, %c0_i32_0 : i32, i32
  }
  func.func @transform_5(%arg0: i32) -> (i32, i32, i32) {
    %c0_i32 = arith.constant 0 : i32
    %c0_i32_0 = arith.constant 0 : i32
    %c0_i32_1 = arith.constant 0 : i32
    return %arg0, %c0_i32, %c0_i32_0 : i32, i32, i32
  }
}

</mosaic_0001>

<llo_original>
// kernel: tpu_custom_call.1
$region0: #{tpu_custom_call.1}
  #allocation0 [shape = 'u32[]', space=smem, size = 0x4, offset = 0x4, fixed_abs, tag = 'smem constant byte address 0x4 - core index']
  #allocation1 [shape = 'u32[144,128]{1,0:T(1,128)}', space=vmem, size = 0x12000, scoped, tag = 'internal scratch']
  %s0 = inlined_call_operand.hbm [shape: f32[2,16,32], index: 0, kind: input, shape index: {}]
  %s1 = inlined_call_operand.hbm [shape: f32[32,96], index: 1, kind: input, shape index: {}]
  %s2 = inlined_call_operand.hbm [shape: f32[32,64], index: 2, kind: input, shape index: {}]
  %s3 = inlined_call_operand.hbm [shape: f32[32,32], index: 3, kind: input, shape index: {}]
  %s4 = inlined_call_operand.vmem [shape: f32[1,32], index: 4, kind: input, shape index: {}]
  %s5 = inlined_call_operand.hbm [shape: f32[2,16,32], index: 5, kind: output, shape index: {}]
  %s6 = sld [smem:[#allocation0]]
  $region69: #{tpu_custom_call.1} parent=0
    _
  %s8 = ssub.s32 1, %s6
  %s9 = scalar_select 0, %s8, %s6
  $region1: #{tpu_custom_call.1} parent=0
    #allocation2 [shape = 'u8[16384]{0}', space=vmem, size = 0x4000, scoped, tag = 'input window, operand 0']
    #allocation3 [shape = 's32[2]{0}', space=sflag, size = 0x8, scoped, tag = 'scoped memory for tpu_custom_call.1']
    #allocation4 [shape = 's32[2]{0}', space=sflag, size = 0x8, scoped, tag = 'scoped memory for tpu_custom_call.1']
    #allocation5 [shape = 'u8[16384]{0}', space=vmem, size = 0x4000, scoped, tag = 'input window, operand 1, single buffered']
    #allocation6 [shape = 's32[1]{0}', space=sflag, size = 0x4, scoped, tag = 'scoped memory for tpu_custom_call.1']
    #allocation7 [shape = 'u8[16384]{0}', space=vmem, size = 0x4000, scoped, tag = 'input window, operand 2, single buffered']
    #allocation8 [shape = 'u8[16384]{0}', space=vmem, size = 0x4000, scoped, tag = 'input window, operand 3, single buffered']
    #allocation9 [shape = 's32[1]{0}', space=sflag, size = 0x4, scoped, tag = 'scoped memory for tpu_custom_call.1']
    #allocation10 [shape = 'u8[16384]{0}', space=vmem, size = 0x4000, scoped, tag = 'output window, operand 0']
    %10 = vsyncpa [#allocation3], 0
    %s11 = scalar_lea.sflag [#allocation3], 1
    %12 = vsyncpa %s11, 0
    %13 = vsyncpa [#allocation6], 0
    %14 = vsyncpa [#allocation9], 0
    %15 = vsyncpa [#allocation4], 0
    %s16 = scalar_lea.sflag [#allocation4], 1
    %17 = vsyncpa %s16, 0
    loop: start=0, step=1, limit=4
    $region2: #{tpu_custom_call.1} parent=1 // loop_pre_header
      _
    $region3: #{tpu_custom_call.1} parent=1 // loop_header
      %s19 = sphi 0, %s23
      %p20 = scmp.ge.s32.totalorder %s19, 4
      %s29 = sphi 0, %s31
      %s32 = sphi 0, %s29
      %s33 = sphi 0, %s32
      %s49 = sphi 0, %s33
      %s53 = sphi 0, %s53
      %s55 = sphi 0, %s53
      %s56 = sphi 0, %s55
      %s70 = sphi 0, %s56
      %s74 = sphi 0, %s74
      %s76 = sphi 0, %s74
      %s77 = sphi 0, %s76
      %s91 = sphi 0, %s77
      %s95 = sphi 0, %s95
      %s97 = sphi 0, %s95
      %s98 = sphi 0, %s97
      %s112 = sphi 0, %s98
      %s116 = sphi 0, %s116
      %s118 = sphi 0, %s116
      %s119 = sphi 0, %s118
      %s133 = sphi 0, %s119
      %s139 = sphi 0, %s141
      %s142 = sphi 0, %s139
      %s143 = sphi 0, %s142
      %s159 = sphi 0, %s143
    $region4: #{tpu_custom_call.1} parent=1 // loop_header_branch
      %22 = sbr.rel (%p20) target = $region8
    $region5: #{tpu_custom_call.1} parent=1 // loop_body
      %s24 = ssub.s32 %s19, 1
      %s25 = ssub.s32 %s19, 2
      %s26 = sadd.s32 %s19, 1
      %s27 = ssub.s32 %s19, %s26
      %p28 = scmp.eq.s32.totalorder %s27, 0
      %s30 = sadd.s32 %s29, 1
      %s31 = scalar_select %p28, %s29, %s30
      %p34 = pneg %p28
      %p35 = scmp.eq.s32.totalorder %s19, 1
      %p36 = por %p34, %p35
      %p37 = scmp.ne.s32.totalorder %s29, %s32
      %p38 = scmp.eq.s32.totalorder %s19, 0
      %p39 = por %p37, %p38
      %p40 = scmp.ne.s32.totalorder %s29, %s32
      %p41 = scmp.eq.s32.totalorder %s24, 1
      %p42 = por %p40, %p41
      %p43 = scmp.ne.s32.totalorder %s32, %s33
      %p44 = scmp.eq.s32.totalorder %s24, 0
      %p45 = por %p43, %p44
      %p46 = scmp.ne.s32.totalorder %s32, %s33
      %p47 = scmp.eq.s32.totalorder %s25, 1
      %p48 = por %p46, %p47
      %p50 = scmp.ne.s32.totalorder %s33, %s49
      %p51 = scmp.eq.s32.totalorder %s25, 0
      %p52 = por %p50, %p51
      %s54 = sadd.s32 %s53, 1
      %p57 = scmp.eq.s32.totalorder %s19, 1
      %p58 = scmp.ne.s32.totalorder %s53, %s55
      %p59 = scmp.eq.s32.totalorder %s19, 0
      %p60 = por %p58, %p59
      %p61 = scmp.ne.s32.totalorder %s53, %s55
      %p62 = scmp.eq.s32.totalorder %s24, 1
      %p63 = por %p61, %p62
      %p64 = scmp.ne.s32.totalorder %s55, %s56
      %p65 = scmp.eq.s32.totalorder %s24, 0
      %p66 = por %p64, %p65
      %p67 = scmp.ne.s32.totalorder %s55, %s56
      %p68 = scmp.eq.s32.totalorder %s25, 1
      %p69 = por %p67, %p68
      %p71 = scmp.ne.s32.totalorder %s56, %s70
      %p72 = scmp.eq.s32.totalorder %s25, 0
      %p73 = por %p71, %p72
      %s75 = sadd.s32 %s74, 1
      %p78 = scmp.eq.s32.totalorder %s19, 1
      %p79 = scmp.ne.s32.totalorder %s74, %s76
      %p80 = scmp.eq.s32.totalorder %s19, 0
      %p81 = por %p79, %p80
      %p82 = scmp.ne.s32.totalorder %s74, %s76
      %p83 = scmp.eq.s32.totalorder %s24, 1
      %p84 = por %p82, %p83
      %p85 = scmp.ne.s32.totalorder %s76, %s77
      %p86 = scmp.eq.s32.totalorder %s24, 0
      %p87 = por %p85, %p86
      %p88 = scmp.ne.s32.totalorder %s76, %s77
      %p89 = scmp.eq.s32.totalorder %s25, 1
      %p90 = por %p88, %p89
      %p92 = scmp.ne.s32.totalorder %s77, %s91
      %p93 = scmp.eq.s32.totalorder %s25, 0
      %p94 = por %p92, %p93
      %s96 = sadd.s32 %s95, 1
      %p99 = scmp.eq.s32.totalorder %s19, 1
      %p100 = scmp.ne.s32.totalorder %s95, %s97
      %p101 = scmp.eq.s32.totalorder %s19, 0
      %p102 = por %p100, %p101
      %p103 = scmp.ne.s32.totalorder %s95, %s97
      %p104 = scmp.eq.s32.totalorder %s24, 1
      %p105 = por %p103, %p104
      %p106 = scmp.ne.s32.totalorder %s97, %s98
      %p107 = scmp.eq.s32.totalorder %s24, 0
      %p108 = por %p106, %p107
      %p109 = scmp.ne.s32.totalorder %s97, %s98
      %p110 = scmp.eq.s32.totalorder %s25, 1
      %p111 = por %p109, %p110
      %p113 = scmp.ne.s32.totalorder %s98, %s112
      %p114 = scmp.eq.s32.totalorder %s25, 0
      %p115 = por %p113, %p114
      %s117 = sadd.s32 %s116, 1
      %p120 = scmp.eq.s32.totalorder %s19, 1
      %p121 = scmp.ne.s32.totalorder %s116, %s118
      %p122 = scmp.eq.s32.totalorder %s19, 0
      %p123 = por %p121, %p122
      %p124 = scmp.ne.s32.totalorder %s116, %s118
      %p125 = scmp.eq.s32.totalorder %s24, 1
      %p126 = por %p124, %p125
      %p127 = scmp.ne.s32.totalorder %s118, %s119
      %p128 = scmp.eq.s32.totalorder %s24, 0
      %p129 = por %p127, %p128
      %p130 = scmp.ne.s32.totalorder %s118, %s119
      %p131 = scmp.eq.s32.totalorder %s25, 1
      %p132 = por %p130, %p131
      %p134 = scmp.ne.s32.totalorder %s119, %s133
      %p135 = scmp.eq.s32.totalorder %s25, 0
      %p136 = por %p134, %p135
      %s137 = ssub.s32 %s19, %s26
      %p138 = scmp.eq.s32.totalorder %s137, 0
      %s140 = sadd.s32 %s139, 1
      %s141 = scalar_select %p138, %s139, %s140
      %p144 = pneg %p138
      %p145 = scmp.eq.s32.totalorder %s19, 1
      %p146 = por %p144, %p145
      %p147 = scmp.ne.s32.totalorder %s139, %s142
      %p148 = scmp.eq.s32.totalorder %s19, 0
      %p149 = por %p147, %p148
      %p150 = scmp.ne.s32.totalorder %s139, %s142
      %p151 = scmp.eq.s32.totalorder %s24, 1
      %p152 = por %p150, %p151
      %p153 = scmp.ne.s32.totalorder %s142, %s143
      %p154 = scmp.eq.s32.totalorder %s24, 0
      %p155 = por %p153, %p154
      %p156 = scmp.ne.s32.totalorder %s142, %s143
      %p157 = scmp.eq.s32.totalorder %s25, 1
      %p158 = por %p156, %p157
      %p160 = scmp.ne.s32.totalorder %s143, %s159
      %p161 = scmp.eq.s32.totalorder %s25, 0
      %p162 = por %p160, %p161
      %p163 = scmp.le.s32.totalorder 1, %s19
      %p164 = scmp.lt.s32.totalorder %s19, 3
      %p165 = pnand %p163, %p164
      %p166 = pneg %p165
      // Predicated region
      $region9: #{tpu_custom_call.1} parent=5 // pred_check
        _
      $region10: #{tpu_custom_call.1} parent=5 // pred_check_branch
        %168 = sbr.rel (%p165) target = $region12
      $region11: #{tpu_custom_call.1} parent=5 // pred_region
        %s169 = ssub.s32 %s19, 1
        // Predicated region
        $region13: #{tpu_custom_call.1} parent=11 // pred_check
          %p170 = pneg %p66
        $region14: #{tpu_custom_call.1} parent=11 // pred_check_branch
          %172 = sbr.rel (%p170) target = $region16
        $region15: #{tpu_custom_call.1} parent=11 // pred_region
          %s174 = ssub.s32 512, 512
          %175 = vsyncadd [#allocation6], %s174
          %s176 = sshll.u32 [#allocation5], 4
          %s177 = int_to_ptr.vmem [resolvable:$true] %s176
          %182 = dma.hbm_to_vmem [thread:$0]  %s1, 512, %s177, [#allocation6], 128, 128, 8
        $region16: #{tpu_custom_call.1} parent=11 // pred_fallthru
          _
        // Predicated region
        $region17: #{tpu_custom_call.1} parent=11 // pred_check
          %p183 = pneg %p87
        $region18: #{tpu_custom_call.1} parent=11 // pred_check_branch
          %185 = sbr.rel (%p183) target = $region20
        $region19: #{tpu_custom_call.1} parent=11 // pred_region
          %s187 = ssub.s32 512, 512
          %188 = vsyncadd [#allocation6], %s187
          %s189 = sshll.u32 [#allocation7], 4
          %s190 = int_to_ptr.vmem [resolvable:$true] %s189
          %195 = dma.hbm_to_vmem [thread:$0]  %s2, 512, %s190, [#allocation6], 128, 128, 8
        $region20: #{tpu_custom_call.1} parent=11 // pred_fallthru
          _
        // Predicated region
        $region21: #{tpu_custom_call.1} parent=11 // pred_check
          %p196 = pneg %p108
        $region22: #{tpu_custom_call.1} parent=11 // pred_check_branch
          %198 = sbr.rel (%p196) target = $region24
        $region23: #{tpu_custom_call.1} parent=11 // pred_region
          %s200 = ssub.s32 512, 512
          %201 = vsyncadd [#allocation9], %s200
          %s202 = sshll.u32 [#allocation8], 4
          %s203 = int_to_ptr.vmem [resolvable:$true] %s202
          %208 = dma.hbm_to_vmem [thread:$0]  %s3, 512, %s203, [#allocation9], 128, 128, 8
        $region24: #{tpu_custom_call.1} parent=11 // pred_fallthru
          _
        // Predicated region
        $region25: #{tpu_custom_call.1} parent=11 // pred_check
          %p209 = pneg %p129
        $region26: #{tpu_custom_call.1} parent=11 // pred_check_branch
          %211 = sbr.rel (%p209) target = $region28
        $region27: #{tpu_custom_call.1} parent=11 // pred_region
          _
        $region28: #{tpu_custom_call.1} parent=11 // pred_fallthru
          _
      $region12: #{tpu_custom_call.1} parent=5 // pred_fallthru
        _
      %p212 = scmp.lt.s32.totalorder %s19, 2
      // Predicated region
      $region29: #{tpu_custom_call.1} parent=5 // pred_check
        %p213 = pneg %p212
      $region30: #{tpu_custom_call.1} parent=5 // pred_check_branch
        %215 = sbr.rel (%p213) target = $region32
      $region31: #{tpu_custom_call.1} parent=5 // pred_region
        // Predicated region
        $region33: #{tpu_custom_call.1} parent=31 // pred_check
          %p216 = pneg %p39
        $region34: #{tpu_custom_call.1} parent=31 // pred_check_branch
          %218 = sbr.rel (%p216) target = $region36
        $region35: #{tpu_custom_call.1} parent=31 // pred_region
          %s219 = sand.u32 %s29, 1
          %s220 = scalar_lea.sflag [#allocation3], %s219
          %s221 = sand.u32 %s29, 1
          %s222 = smul.addr %s221, 16
          %s223 = scalar_lea.vmem [#allocation2], %s222
          %s225 = ssub.s32 256, 256
          %226 = vsyncadd %s220, %s225
          %s227 = smul.addr %s19, 2
          %s228 = smul.addr %s227, 128
          %s229 = scalar_lea.hbm %s0, %s228
          %s230 = sshll.u32 %s223, 4
          %s231 = int_to_ptr.vmem [resolvable:$true] %s230
          %236 = dma.hbm_to_vmem [thread:$0]  %s229, 256, %s231, %s220, 128, 128, 8
        $region36: #{tpu_custom_call.1} parent=31 // pred_fallthru
          _
      $region32: #{tpu_custom_call.1} parent=5 // pred_fallthru
        _
      %p237 = scmp.le.s32.totalorder 1, %s19
      %p238 = scmp.lt.s32.totalorder %s19, 3
      %p239 = pnand %p237, %p238
      %p240 = pneg %p239
      // Predicated region
      $region37: #{tpu_custom_call.1} parent=5 // pred_check
        _
      $region38: #{tpu_custom_call.1} parent=5 // pred_check_branch
        %242 = sbr.rel (%p239) target = $region40
      $region39: #{tpu_custom_call.1} parent=5 // pred_region
        %s243 = ssub.s32 %s19, 1
        %s244 = sand.u32 %s32, 1
        %s245 = scalar_lea.sflag [#allocation3], %s244
        %s246 = sand.u32 %s32, 1
        %s247 = smul.addr %s246, 16
        %s248 = scalar_lea.vmem [#allocation2], %s247
        // Predicated region
        $region41: #{tpu_custom_call.1} parent=39 // pred_check
          %p249 = pneg %p45
        $region42: #{tpu_custom_call.1} parent=39 // pred_check_branch
          %251 = sbr.rel (%p249) target = $region44
        $region43: #{tpu_custom_call.1} parent=39 // pred_region
          %252 = dma.done %s245, 256
        $region44: #{tpu_custom_call.1} parent=39 // pred_fallthru
          _
        // Predicated region
        $region45: #{tpu_custom_call.1} parent=39 // pred_check
          %p253 = pneg %p66
        $region46: #{tpu_custom_call.1} parent=39 // pred_check_branch
          %255 = sbr.rel (%p253) target = $region48
        $region47: #{tpu_custom_call.1} parent=39 // pred_region
          %256 = dma.done [#allocation6], 512
        $region48: #{tpu_custom_call.1} parent=39 // pred_fallthru
          _
        // Predicated region
        $region49: #{tpu_custom_call.1} parent=39 // pred_check
          %p257 = pneg %p87
        $region50: #{tpu_custom_call.1} parent=39 // pred_check_branch
          %259 = sbr.rel (%p257) target = $region52
        $region51: #{tpu_custom_call.1} parent=39 // pred_region
          %260 = dma.done [#allocation6], 512
        $region52: #{tpu_custom_call.1} parent=39 // pred_fallthru
          _
        // Predicated region
        $region53: #{tpu_custom_call.1} parent=39 // pred_check
          %p261 = pneg %p108
        $region54: #{tpu_custom_call.1} parent=39 // pred_check_branch
          %263 = sbr.rel (%p261) target = $region56
        $region55: #{tpu_custom_call.1} parent=39 // pred_region
          %264 = dma.done [#allocation9], 512
        $region56: #{tpu_custom_call.1} parent=39 // pred_fallthru
          _
        %s265 = sand.u32 %s32, 1
        %s266 = scalar_lea.sflag [#allocation3], %s265
        %s267 = sand.u32 %s32, 1
        %s268 = smul.addr %s267, 16
        %s269 = scalar_lea.vmem [#allocation2], %s268
        %p270 = pneg %p45
        %p271 = pneg %p42
        %p272 = pneg %p66
        %p273 = pneg %p63
        %p274 = pneg %p87
        %p275 = pneg %p84
        %p276 = pneg %p108
        %p277 = pneg %p105
        %p278 = pneg %p129
        %p279 = pneg %p126
        %p280 = pneg %p155
        %p281 = pneg %p152
        %s282 = sand.u32 %s142, 1
        %s283 = scalar_lea.sflag [#allocation4], %s282
        %s284 = sand.u32 %s142, 1
        %s285 = smul.addr %s284, 16
        %s286 = scalar_lea.vmem [#allocation10], %s285
        %v287 = vld [vmem:[%s248] sm:$0xff]
        %v288 = vld [vmem:[%s248 + $0x8] sm:$0xff]
        %v289 = vld [vmem:[#allocation5] sm:$0xff]
        %v290 = vld [vmem:[#allocation5 + $0x8] sm:$0xff]
        %v291 = vld [vmem:[#allocation5 + $0x10] sm:$0xff]
        %v292 = vld [vmem:[#allocation5 + $0x18] sm:$0xff]
        %vm293 = vcmask 261120
        %v295 = vsel %vm293, %v287, 0
        %v298 = vsel %vm293, %v288, 0
        %300 = vmatprep.subr.mxu0 0.0
        %301 = vmatpush1.msra.mxu0 %v289
        %302 = vmatprep.subr.mxu0 0.0
        %303 = vmatpush1.msra.mxu0 %v290
        %304 = vmatprep.subr.mxu0 0.0
        %305 = vmatpush1.msra.mxu0 %v291
        %306 = vmatprep.subr.mxu0 0.0
        %307 = vmatpush1.msra.mxu0 %v292
        %308 = vmatprep.subr.mxu0 0.0
        %309 = vmatpush1.msra.mxu0 0.0
        %310 = vmatprep.subr.mxu0 0.0
        %311 = vmatpush1.msra.mxu0 0.0
        %312 = vmatprep.subr.mxu0 0.0
        %313 = vmatpush1.msra.mxu0 0.0
        %314 = vmatprep.subr.mxu0 0.0
        %315 = vmatpush1.msra.mxu0 0.0
        %316 = vmatprep.subr.mxu0 0.0
        %317 = vmatpush1.msra.mxu0 0.0
        %318 = vmatprep.subr.mxu0 0.0
        %319 = vmatpush1.msra.mxu0 0.0
        %320 = vmatprep.subr.mxu0 0.0
        %321 = vmatpush1.msra.mxu0 0.0
        %322 = vmatprep.subr.mxu0 0.0
        %323 = vmatpush1.msra.mxu0 0.0
        %324 = vmatprep.subr.mxu0 0.0
        %325 = vmatpush1.msra.mxu0 0.0
        %326 = vmatprep.subr.mxu0 0.0
        %327 = vmatpush1.msra.mxu0 0.0
        %328 = vmatprep.subr.mxu0 0.0
        %329 = vmatpush1.msra.mxu0 0.0
        %330 = vmatprep.subr.mxu0 0.0
        %331 = vmatpush1.msra.mxu0 0.0
        %332 = vmatprep.subr.mxu0 0.0
        %333 = vmatpush1.msra.mxu0 0.0
        %334 = vmatprep.subr.mxu0 0.0
        %335 = vmatpush1.msra.mxu0 0.0
        %336 = vmatprep.subr.mxu0 0.0
        %337 = vmatpush1.msra.mxu0 0.0
        %338 = vmatprep.subr.mxu0 0.0
        %339 = vmatpush1.msra.mxu0 0.0
        %340 = vmatprep.subr.mxu0 0.0
        %341 = vmatpush1.msra.mxu0 0.0
        %342 = vmatprep.subr.mxu0 0.0
        %343 = vmatpush1.msra.mxu0 0.0
        %344 = vmatprep.subr.mxu0 0.0
        %345 = vmatpush1.msra.mxu0 0.0
        %346 = vmatprep.subr.mxu0 0.0
        %347 = vmatpush1.msra.mxu0 0.0
        %348 = vmatprep.subr.mxu0 0.0
        %349 = vmatpush1.msra.mxu0 0.0
        %350 = vmatprep.subr.mxu0 0.0
        %351 = vmatpush1.msra.mxu0 0.0
        %352 = vmatprep.subr.mxu0 0.0
        %353 = vmatpush1.msra.mxu0 0.0
        %354 = vmatprep.subr.mxu0 0.0
        %355 = vmatpush1.msra.mxu0 0.0
        %356 = vmatprep.subr.mxu0 0.0
        %357 = vmatpush1.msra.mxu0 0.0
        %358 = vmatprep.subr.mxu0 0.0
        %359 = vmatpush1.msra.mxu0 0.0
        %360 = vmatprep.subr.mxu0 0.0
        %361 = vmatpush1.msra.mxu0 0.0
        %362 = vmatprep.subr.mxu0 0.0
        %363 = vmatpush1.msra.mxu0 0.0
        %364 = vmatprep.mubr.f32.mxu0 0.0
        %365 = vmatmul.mubr.f32.gmra.mrb[0].mxu0 %v295
        %v366 = vpop.f32.mrb[0].mxu0
        %v367 = vadd.f32 0.0, %v366
        %v368 = vpop.f32.mrb[0].mxu0
        %369 = vmatprep.mubr.f32.mxu0 0.0
        %370 = vmatmul.mubr.f32.gmra.mrb[0].mxu0 %v298
        %v371 = vpop.f32.mrb[0].mxu0
        %v372 = vadd.f32 0.0, %v371
        %v373 = vpop.f32.mrb[0].mxu0
        %374 = vdwg.mxu0
        %v375 = vmul.f32 %v367, 0.59460354
        %v376 = vmul.f32 %v372, 0.59460354
        %v377 = vld [vmem:[#allocation7] sm:$0xff]
        %v378 = vld [vmem:[#allocation7 + $0x8] sm:$0xff]
        %v379 = vld [vmem:[#allocation7 + $0x10] sm:$0xff]
        %v380 = vld [vmem:[#allocation7 + $0x18] sm:$0xff]
        %v382 = vsel %vm293, %v375, 0
        %v385 = vsel %vm293, %v376, 0
        %387 = vmatprep.subr.mxu0 0.0
        %388 = vmatpush1.msra.mxu0 %v377
        %389 = vmatprep.subr.mxu0 0.0
        %390 = vmatpush1.msra.mxu0 %v378
        %391 = vmatprep.subr.mxu0 0.0
        %392 = vmatpush1.msra.mxu0 %v379
        %393 = vmatprep.subr.mxu0 0.0
        %394 = vmatpush1.msra.mxu0 %v380
        %395 = vmatprep.subr.mxu0 0.0
        %396 = vmatpush1.msra.mxu0 0.0
        %397 = vmatprep.subr.mxu0 0.0
        %398 = vmatpush1.msra.mxu0 0.0
        %399 = vmatprep.subr.mxu0 0.0
        %400 = vmatpush1.msra.mxu0 0.0
        %401 = vmatprep.subr.mxu0 0.0
        %402 = vmatpush1.msra.mxu0 0.0
        %403 = vmatprep.subr.mxu0 0.0
        %404 = vmatpush1.msra.mxu0 0.0
        %405 = vmatprep.subr.mxu0 0.0
        %406 = vmatpush1.msra.mxu0 0.0
        %407 = vmatprep.subr.mxu0 0.0
        %408 = vmatpush1.msra.mxu0 0.0
        %409 = vmatprep.subr.mxu0 0.0
        %410 = vmatpush1.msra.mxu0 0.0
        %411 = vmatprep.subr.mxu0 0.0
        %412 = vmatpush1.msra.mxu0 0.0
        %413 = vmatprep.subr.mxu0 0.0
        %414 = vmatpush1.msra.mxu0 0.0
        %415 = vmatprep.subr.mxu0 0.0
        %416 = vmatpush1.msra.mxu0 0.0
        %417 = vmatprep.subr.mxu0 0.0
        %418 = vmatpush1.msra.mxu0 0.0
        %419 = vmatprep.subr.mxu0 0.0
        %420 = vmatpush1.msra.mxu0 0.0
        %421 = vmatprep.subr.mxu0 0.0
        %422 = vmatpush1.msra.mxu0 0.0
        %423 = vmatprep.subr.mxu0 0.0
        %424 = vmatpush1.msra.mxu0 0.0
        %425 = vmatprep.subr.mxu0 0.0
        %426 = vmatpush1.msra.mxu0 0.0
        %427 = vmatprep.subr.mxu0 0.0
        %428 = vmatpush1.msra.mxu0 0.0
        %429 = vmatprep.subr.mxu0 0.0
        %430 = vmatpush1.msra.mxu0 0.0
        %431 = vmatprep.subr.mxu0 0.0
        %432 = vmatpush1.msra.mxu0 0.0
        %433 = vmatprep.subr.mxu0 0.0
        %434 = vmatpush1.msra.mxu0 0.0
        %435 = vmatprep.subr.mxu0 0.0
        %436 = vmatpush1.msra.mxu0 0.0
        %437 = vmatprep.subr.mxu0 0.0
        %438 = vmatpush1.msra.mxu0 0.0
        %439 = vmatprep.subr.mxu0 0.0
        %440 = vmatpush1.msra.mxu0 0.0
        %441 = vmatprep.subr.mxu0 0.0
        %442 = vmatpush1.msra.mxu0 0.0
        %443 = vmatprep.subr.mxu0 0.0
        %444 = vmatpush1.msra.mxu0 0.0
        %445 = vmatprep.subr.mxu0 0.0
        %446 = vmatpush1.msra.mxu0 0.0
        %447 = vmatprep.subr.mxu0 0.0
        %448 = vmatpush1.msra.mxu0 0.0
        %449 = vmatprep.subr.mxu0 0.0
        %450 = vmatpush1.msra.mxu0 0.0
        %451 = vmatprep.mubr.f32.mxu0 0.0
        %452 = vmatmul.mubr.f32.gmra.mrb[0].mxu0 %v382
        %v453 = vpop.f32.mrb[0].mxu0
        %v454 = vadd.f32 0.0, %v453
        %v455 = vpop.f32.mrb[0].mxu0
        %456 = vmatprep.mubr.f32.mxu0 0.0
        %457 = vmatmul.mubr.f32.gmra.mrb[0].mxu0 %v385
        %v458 = vpop.f32.mrb[0].mxu0
        %v459 = vadd.f32 0.0, %v458
        %v460 = vpop.f32.mrb[0].mxu0
        %461 = vdwg.mxu0
        %462 = vrot.lane.b32.xlu0 %v375, 96
        %v463 = vpop.permute.xlu0 %462
        %464 = vrot.lane.b32.xlu0 %v376, 96
        %v465 = vpop.permute.xlu0 %464
        %v466 = vsel %vm293, %v463, 0
        %v468 = vsel %vm293, %v465, 0
        %470 = vmatprep.subr.mxu0 0.0
        %471 = vmatpush1.msra.mxu0 %v377
        %472 = vmatprep.subr.mxu0 0.0
        %473 = vmatpush1.msra.mxu0 %v378
        %474 = vmatprep.subr.mxu0 0.0
        %475 = vmatpush1.msra.mxu0 %v379
        %476 = vmatprep.subr.mxu0 0.0
        %477 = vmatpush1.msra.mxu0 %v380
        %478 = vmatprep.subr.mxu0 0.0
        %479 = vmatpush1.msra.mxu0 0.0
        %480 = vmatprep.subr.mxu0 0.0
        %481 = vmatpush1.msra.mxu0 0.0
        %482 = vmatprep.subr.mxu0 0.0
        %483 = vmatpush1.msra.mxu0 0.0
        %484 = vmatprep.subr.mxu0 0.0
        %485 = vmatpush1.msra.mxu0 0.0
        %486 = vmatprep.subr.mxu0 0.0
        %487 = vmatpush1.msra.mxu0 0.0
        %488 = vmatprep.subr.mxu0 0.0
        %489 = vmatpush1.msra.mxu0 0.0
        %490 = vmatprep.subr.mxu0 0.0
        %491 = vmatpush1.msra.mxu0 0.0
        %492 = vmatprep.subr.mxu0 0.0
        %493 = vmatpush1.msra.mxu0 0.0
        %494 = vmatprep.subr.mxu0 0.0
        %495 = vmatpush1.msra.mxu0 0.0
        %496 = vmatprep.subr.mxu0 0.0
        %497 = vmatpush1.msra.mxu0 0.0
        %498 = vmatprep.subr.mxu0 0.0
        %499 = vmatpush1.msra.mxu0 0.0
        %500 = vmatprep.subr.mxu0 0.0
        %501 = vmatpush1.msra.mxu0 0.0
        %502 = vmatprep.subr.mxu0 0.0
        %503 = vmatpush1.msra.mxu0 0.0
        %504 = vmatprep.subr.mxu0 0.0
        %505 = vmatpush1.msra.mxu0 0.0
        %506 = vmatprep.subr.mxu0 0.0
        %507 = vmatpush1.msra.mxu0 0.0
        %508 = vmatprep.subr.mxu0 0.0
        %509 = vmatpush1.msra.mxu0 0.0
        %510 = vmatprep.subr.mxu0 0.0
        %511 = vmatpush1.msra.mxu0 0.0
        %512 = vmatprep.subr.mxu0 0.0
        %513 = vmatpush1.msra.mxu0 0.0
        %514 = vmatprep.subr.mxu0 0.0
        %515 = vmatpush1.msra.mxu0 0.0
        %516 = vmatprep.subr.mxu0 0.0
        %517 = vmatpush1.msra.mxu0 0.0
        %518 = vmatprep.subr.mxu0 0.0
        %519 = vmatpush1.msra.mxu0 0.0
        %520 = vmatprep.subr.mxu0 0.0
        %521 = vmatpush1.msra.mxu0 0.0
        %522 = vmatprep.subr.mxu0 0.0
        %523 = vmatpush1.msra.mxu0 0.0
        %524 = vmatprep.subr.mxu0 0.0
        %525 = vmatpush1.msra.mxu0 0.0
        %526 = vmatprep.subr.mxu0 0.0
        %527 = vmatpush1.msra.mxu0 0.0
        %528 = vmatprep.subr.mxu0 0.0
        %529 = vmatpush1.msra.mxu0 0.0
        %530 = vmatprep.subr.mxu0 0.0
        %531 = vmatpush1.msra.mxu0 0.0
        %532 = vmatprep.subr.mxu0 0.0
        %533 = vmatpush1.msra.mxu0 0.0
        %534 = vmatprep.mubr.f32.mxu0 0.0
        %535 = vmatmul.mubr.f32.gmra.mrb[0].mxu0 %v466
        %v536 = vpop.f32.mrb[0].mxu0
        %v537 = vadd.f32 0.0, %v536
        %v538 = vpop.f32.mrb[0].mxu0
        %539 = vmatprep.mubr.f32.mxu0 0.0
        %540 = vmatmul.mubr.f32.gmra.mrb[0].mxu0 %v468
        %v541 = vpop.f32.mrb[0].mxu0
        %v542 = vadd.f32 0.0, %v541
        %v543 = vpop.f32.mrb[0].mxu0
        %544 = vdwg.mxu0
        %vm545 = vcmask 523264
        %v546 = vsel %vm545, %v537, -inf
        %v547 = vsel %vm545, %v542, -inf
        %v548 = vmax.f32 %v546, %v547
        %549 = vmax.xlane.f32.xlu0 %v548
        %v550 = vpop.xlane.xlu0 %549
        %v551 = vrot.slane %v550, 4
        %v552 = vmax.f32 %v550, %v551
        %v553 = vrot.slane %v552, 2
        %v554 = vmax.f32 %v552, %v553
        %v555 = vrot.slane %v554, 1
        %v556 = vmax.f32 %v554, %v555
        %s557 = vtos %v556
        %v558 = vld [vmem:[#allocation8] sm:$0xff]
        %v559 = vld [vmem:[#allocation8 + $0x8] sm:$0xff]
        %v560 = vld [vmem:[#allocation8 + $0x10] sm:$0xff]
        %v561 = vld [vmem:[#allocation8 + $0x18] sm:$0xff]
        %v562 = vmul.f32 %v375, %v375
        %v563 = vmul.f32 %v376, %v376
        %vm564 = vcmask 64512
        %v565 = vsel %vm564, %v562, 0.0
        %566 = vadd.xlane.f32.xlu0 %v565
        %v567 = vpop.xlane.xlu0 %566
        %v568 = vsel %vm564, %v563, 0.0
        %569 = vadd.xlane.f32.xlu0 %v568
        %v570 = vpop.xlane.xlu0 %569
        %v571 = vmul.f32 %v567, 0.5
        %v572 = vmul.f32 %v570, 0.5
        %575 = vrot.lane.b32.xlu0 %v562, 96
        %v576 = vpop.permute.xlu0 %575
        %577 = vrot.lane.b32.xlu0 %v563, 96
        %v578 = vpop.permute.xlu0 %577
        %v581 = vsel %vm564, %v576, 0.0
        %582 = vadd.xlane.f32.xlu0 %v581
        %v583 = vpop.xlane.xlu0 %582
        %v584 = vsel %vm564, %v578, 0.0
        %585 = vadd.xlane.f32.xlu0 %v584
        %v586 = vpop.xlane.xlu0 %585
        %v587 = vmul.f32 %v583, 0.5
        %v588 = vmul.f32 %v586, 0.5
        %v589 = vsub.f32 %v454, %v571
        %v590 = vsub.f32 %v459, %v572
        %vm591 = vcmask 130048
        %v592 = vsel %vm591, %v454, -inf
        %593 = vmax.xlane.f32.xlu0 %v592
        %v594 = vpop.xlane.xlu0 %593
        %v595 = vsel %vm591, %v459, -inf
        %596 = vmax.xlane.f32.xlu0 %v595
        %v597 = vpop.xlane.xlu0 %596
        %v598 = vsub.f32 %v589, %v594
        %v599 = vsub.f32 %v590, %v597
        %v600 = vmul.f32 %v598, 1.442695
        %v601 = vpow.pop %v600
        %v602 = vmul.f32 %v599, 1.442695
        %v603 = vpow.pop %v602
        %v604 = vadd.f32 %v601, 0.0001
        %v605 = vadd.f32 %v603, 0.0001
        %v606 = vmul.f32 %v604, 0.25
        %v607 = vmul.f32 %v605, 0.25
        %v608 = vsub.f32 %v537, %v587
        %v609 = vsub.f32 %v542, %v588
        %v610 = vstv %s557
        %v611 = vsub.f32 %v608, %v610
        %v612 = vsub.f32 %v609, %v610
        %v613 = vmul.f32 %v611, 1.442695
        %v614 = vpow.pop %v613
        %v615 = vmul.f32 %v612, 1.442695
        %v616 = vpow.pop %v615
        %v617 = vadd.f32 %v614, 0.0001
        %v618 = vadd.f32 %v616, 0.0001
        %v619 = vmul.f32 %v617, 0.25
        %v620 = vmul.f32 %v618, 0.25
        %621 = vxpose.xlu0.b32.start [1/16] %v619, 128
        %622 = vxpose.xlu0.b32.cont [2/16] %v620, 128
        %623 = vxpose.xlu0.b32.cont [3/16] 0.0, 128
        %624 = vxpose.xlu0.b32.cont [4/16] 0.0, 128
        %625 = vxpose.xlu0.b32.cont [5/16] 0.0, 128
        %626 = vxpose.xlu0.b32.cont [6/16] 0.0, 128
        %627 = vxpose.xlu0.b32.cont [7/16] 0.0, 128
        %628 = vxpose.xlu0.b32.cont [8/16] 0.0, 128
        %629 = vxpose.xlu0.b32.cont [9/16] 0.0, 128
        %630 = vxpose.xlu0.b32.cont [10/16] 0.0, 128
        %631 = vxpose.xlu0.b32.cont [11/16] 0.0, 128
        %632 = vxpose.xlu0.b32.cont [12/16] 0.0, 128
        %633 = vxpose.xlu0.b32.cont [13/16] 0.0, 128
        %634 = vxpose.xlu0.b32.cont [14/16] 0.0, 128
        %635 = vxpose.xlu0.b32.cont [15/16] 0.0, 128
        %636 = vxpose.xlu0.b32.end [16/16] 0.0, 128
        %v637 = vpop.trf.xlu0
        %v638 = vpop.trf.xlu0
        %v639 = vpop.trf.xlu0
        %v640 = vpop.trf.xlu0
        %v641 = vpop.trf.xlu0
        %v642 = vpop.trf.xlu0
        %v643 = vpop.trf.xlu0
        %v644 = vpop.trf.xlu0
        %v645 = vpop.trf.xlu0
        %v646 = vpop.trf.xlu0
        %v647 = vpop.trf.xlu0
        %v648 = vpop.trf.xlu0
        %v649 = vpop.trf.xlu0
        %v650 = vpop.trf.xlu0
        %v651 = vpop.trf.xlu0
        %v652 = vpop.trf.xlu0
        %655 = vrot.lane.b32.xlu0 %v367, 64
        %v656 = vpop.permute.xlu0 %655
        %657 = vrot.lane.b32.xlu0 %v372, 64
        %v658 = vpop.permute.xlu0 %657
        %v662 = vsel %vm591, %v637, 0
        %v665 = vsel %vm591, %v638, 0
        %667 = vmatprep.subr.mxu0 0.0
        %668 = vmatpush1.msra.mxu0 %v656
        %669 = vmatprep.subr.mxu0 0.0
        %670 = vmatpush1.msra.mxu0 %v658
        %671 = vmatprep.subr.mxu0 0.0
        %672 = vmatpush1.msra.mxu0 0.0
        %673 = vmatprep.subr.mxu0 0.0
        %674 = vmatpush1.msra.mxu0 0.0
        %675 = vmatprep.subr.mxu0 0.0
        %676 = vmatpush1.msra.mxu0 0.0
        %677 = vmatprep.subr.mxu0 0.0
        %678 = vmatpush1.msra.mxu0 0.0
        %679 = vmatprep.subr.mxu0 0.0
        %680 = vmatpush1.msra.mxu0 0.0
        %681 = vmatprep.subr.mxu0 0.0
        %682 = vmatpush1.msra.mxu0 0.0
        %683 = vmatprep.subr.mxu0 0.0
        %684 = vmatpush1.msra.mxu0 0.0
        %685 = vmatprep.subr.mxu0 0.0
        %686 = vmatpush1.msra.mxu0 0.0
        %687 = vmatprep.subr.mxu0 0.0
        %688 = vmatpush1.msra.mxu0 0.0
        %689 = vmatprep.subr.mxu0 0.0
        %690 = vmatpush1.msra.mxu0 0.0
        %691 = vmatprep.subr.mxu0 0.0
        %692 = vmatpush1.msra.mxu0 0.0
        %693 = vmatprep.subr.mxu0 0.0
        %694 = vmatpush1.msra.mxu0 0.0
        %695 = vmatprep.subr.mxu0 0.0
        %696 = vmatpush1.msra.mxu0 0.0
        %697 = vmatprep.subr.mxu0 0.0
        %698 = vmatpush1.msra.mxu0 0.0
        %699 = vmatprep.subr.mxu0 0.0
        %700 = vmatpush1.msra.mxu0 0.0
        %701 = vmatprep.subr.mxu0 0.0
        %702 = vmatpush1.msra.mxu0 0.0
        %703 = vmatprep.subr.mxu0 0.0
        %704 = vmatpush1.msra.mxu0 0.0
        %705 = vmatprep.subr.mxu0 0.0
        %706 = vmatpush1.msra.mxu0 0.0
        %707 = vmatprep.subr.mxu0 0.0
        %708 = vmatpush1.msra.mxu0 0.0
        %709 = vmatprep.subr.mxu0 0.0
        %710 = vmatpush1.msra.mxu0 0.0
        %711 = vmatprep.subr.mxu0 0.0
        %712 = vmatpush1.msra.mxu0 0.0
        %713 = vmatprep.subr.mxu0 0.0
        %714 = vmatpush1.msra.mxu0 0.0
        %715 = vmatprep.subr.mxu0 0.0
        %716 = vmatpush1.msra.mxu0 0.0
        %717 = vmatprep.subr.mxu0 0.0
        %718 = vmatpush1.msra.mxu0 0.0
        %719 = vmatprep.subr.mxu0 0.0
        %720 = vmatpush1.msra.mxu0 0.0
        %721 = vmatprep.subr.mxu0 0.0
        %722 = vmatpush1.msra.mxu0 0.0
        %723 = vmatprep.subr.mxu0 0.0
        %724 = vmatpush1.msra.mxu0 0.0
        %725 = vmatprep.subr.mxu0 0.0
        %726 = vmatpush1.msra.mxu0 0.0
        %727 = vmatprep.subr.mxu0 0.0
        %728 = vmatpush1.msra.mxu0 0.0
        %729 = vmatprep.subr.mxu0 0.0
        %730 = vmatpush1.msra.mxu0 0.0
        %731 = vmatprep.mubr.f32.mxu0 0.0
        %732 = vmatmul.mubr.f32.gmra.mrb[0].mxu0 %v662
        %v733 = vpop.f32.mrb[0].mxu0
        %v734 = vadd.f32 0.0, %v733
        %v735 = vpop.f32.mrb[0].mxu0
        %736 = vmatprep.mubr.f32.mxu0 0.0
        %737 = vmatmul.mubr.f32.gmra.mrb[0].mxu0 %v665
        %v738 = vpop.f32.mrb[0].mxu0
        %v739 = vadd.f32 0.0, %v738
        %v740 = vpop.f32.mrb[0].mxu0
        %741 = vdwg.mxu0
        %v742 = vsel %vm591, %v619, 0.0
        %v743 = vsel %vm591, %v620, 0.0
        %v744 = vadd.f32 %v742, %v743
        %v745 = vrot.slane %v744, 4
        %v746 = vadd.f32 %v744, %v745
        %v747 = vrot.slane %v746, 2
        %v748 = vadd.f32 %v746, %v747
        %v749 = vrot.slane %v748, 1
        %v750 = vadd.f32 %v748, %v749
        %v751 = vmul.f32 %v606, %v750
        %v752 = vmul.f32 %v607, %v750
        %v753 = vsel %vm591, %v751, 0.0
        %754 = vadd.xlane.f32.xlu0 %v753
        %v755 = vpop.xlane.xlu0 %754
        %v756 = vsel %vm591, %v752, 0.0
        %757 = vadd.xlane.f32.xlu0 %v756
        %v758 = vpop.xlane.xlu0 %757
        %v760 = vsel %vm591, %v606, 0
        %v763 = vsel %vm591, %v607, 0
        %765 = vmatprep.subr.mxu0 0.0
        %766 = vmatpush1.msra.mxu0 %v734
        %767 = vmatprep.subr.mxu0 0.0
        %768 = vmatpush1.msra.mxu0 %v739
        %769 = vmatprep.subr.mxu0 0.0
        %770 = vmatpush1.msra.mxu0 0.0
        %771 = vmatprep.subr.mxu0 0.0
        %772 = vmatpush1.msra.mxu0 0.0
        %773 = vmatprep.subr.mxu0 0.0
        %774 = vmatpush1.msra.mxu0 0.0
        %775 = vmatprep.subr.mxu0 0.0
        %776 = vmatpush1.msra.mxu0 0.0
        %777 = vmatprep.subr.mxu0 0.0
        %778 = vmatpush1.msra.mxu0 0.0
        %779 = vmatprep.subr.mxu0 0.0
        %780 = vmatpush1.msra.mxu0 0.0
        %781 = vmatprep.subr.mxu0 0.0
        %782 = vmatpush1.msra.mxu0 0.0
        %783 = vmatprep.subr.mxu0 0.0
        %784 = vmatpush1.msra.mxu0 0.0
        %785 = vmatprep.subr.mxu0 0.0
        %786 = vmatpush1.msra.mxu0 0.0
        %787 = vmatprep.subr.mxu0 0.0
        %788 = vmatpush1.msra.mxu0 0.0
        %789 = vmatprep.subr.mxu0 0.0
        %790 = vmatpush1.msra.mxu0 0.0
        %791 = vmatprep.subr.mxu0 0.0
        %792 = vmatpush1.msra.mxu0 0.0
        %793 = vmatprep.subr.mxu0 0.0
        %794 = vmatpush1.msra.mxu0 0.0
        %795 = vmatprep.subr.mxu0 0.0
        %796 = vmatpush1.msra.mxu0 0.0
        %797 = vmatprep.subr.mxu0 0.0
        %798 = vmatpush1.msra.mxu0 0.0
        %799 = vmatprep.subr.mxu0 0.0
        %800 = vmatpush1.msra.mxu0 0.0
        %801 = vmatprep.subr.mxu0 0.0
        %802 = vmatpush1.msra.mxu0 0.0
        %803 = vmatprep.subr.mxu0 0.0
        %804 = vmatpush1.msra.mxu0 0.0
        %805 = vmatprep.subr.mxu0 0.0
        %806 = vmatpush1.msra.mxu0 0.0
        %807 = vmatprep.subr.mxu0 0.0
        %808 = vmatpush1.msra.mxu0 0.0
        %809 = vmatprep.subr.mxu0 0.0
        %810 = vmatpush1.msra.mxu0 0.0
        %811 = vmatprep.subr.mxu0 0.0
        %812 = vmatpush1.msra.mxu0 0.0
        %813 = vmatprep.subr.mxu0 0.0
        %814 = vmatpush1.msra.mxu0 0.0
        %815 = vmatprep.subr.mxu0 0.0
        %816 = vmatpush1.msra.mxu0 0.0
        %817 = vmatprep.subr.mxu0 0.0
        %818 = vmatpush1.msra.mxu0 0.0
        %819 = vmatprep.subr.mxu0 0.0
        %820 = vmatpush1.msra.mxu0 0.0
        %821 = vmatprep.subr.mxu0 0.0
        %822 = vmatpush1.msra.mxu0 0.0
        %823 = vmatprep.subr.mxu0 0.0
        %824 = vmatpush1.msra.mxu0 0.0
        %825 = vmatprep.subr.mxu0 0.0
        %826 = vmatpush1.msra.mxu0 0.0
        %827 = vmatprep.subr.mxu0 0.0
        %828 = vmatpush1.msra.mxu0 0.0
        %829 = vmatprep.mubr.f32.mxu0 0.0
        %830 = vmatmul.mubr.f32.gmra.mrb[0].mxu0 %v760
        %v831 = vpop.f32.mrb[0].mxu0
        %v832 = vadd.f32 0.0, %v831
        %v833 = vpop.f32.mrb[0].mxu0
        %834 = vmatprep.mubr.f32.mxu0 0.0
        %835 = vmatmul.mubr.f32.gmra.mrb[0].mxu0 %v763
        %v836 = vpop.f32.mrb[0].mxu0
        %v837 = vadd.f32 0.0, %v836
        %v838 = vpop.f32.mrb[0].mxu0
        %839 = vdwg.mxu0
        %v840 = vrcp.pop %v755
        %v841 = vrcp.pop %v758
        %v842 = vmul.f32 %v832, %v840
        %v843 = vmul.f32 %v837, %v841
        %844 = vrot.lane.b32.xlu0 %v562, 120
        %v845 = vpop.permute.xlu0 %844
        %846 = vrot.lane.b32.xlu0 %v563, 120
        %v847 = vpop.permute.xlu0 %846
        %v850 = vsel %vm564, %v845, 0.0
        %851 = vadd.xlane.f32.xlu0 %v850
        %v852 = vpop.xlane.xlu0 %851
        %v853 = vsel %vm564, %v847, 0.0
        %854 = vadd.xlane.f32.xlu0 %v853
        %v855 = vpop.xlane.xlu0 %854
        %v856 = vmul.f32 %v852, 0.5
        %v857 = vmul.f32 %v855, 0.5
        %858 = vrot.lane.b32.xlu0 %v562, 88
        %v859 = vpop.permute.xlu0 %858
        %860 = vrot.lane.b32.xlu0 %v563, 88
        %v861 = vpop.permute.xlu0 %860
        %v864 = vsel %vm564, %v859, 0.0
        %865 = vadd.xlane.f32.xlu0 %v864
        %v866 = vpop.xlane.xlu0 %865
        %v867 = vsel %vm564, %v861, 0.0
        %868 = vadd.xlane.f32.xlu0 %v867
        %v869 = vpop.xlane.xlu0 %868
        %v870 = vmul.f32 %v866, 0.5
        %v871 = vmul.f32 %v869, 0.5
        %v872 = vsub.f32 %v454, %v856
        %v873 = vsub.f32 %v459, %v857
        %vm874 = vcmask 261248
        %v875 = vsel %vm874, %v454, -inf
        %876 = vmax.xlane.f32.xlu0 %v875
        %v877 = vpop.xlane.xlu0 %876
        %v878 = vsel %vm874, %v459, -inf
        %879 = vmax.xlane.f32.xlu0 %v878
        %v880 = vpop.xlane.xlu0 %879
        %v881 = vsub.f32 %v872, %v877
        %v882 = vsub.f32 %v873, %v880
        %v883 = vmul.f32 %v881, 1.442695
        %v884 = vpow.pop %v883
        %v885 = vmul.f32 %v882, 1.442695
        %v886 = vpow.pop %v885
        %v887 = vadd.f32 %v884, 0.0001
        %v888 = vadd.f32 %v886, 0.0001
        %v889 = vmul.f32 %v887, 0.25
        %v890 = vmul.f32 %v888, 0.25
        %v891 = vsub.f32 %v537, %v870
        %v892 = vsub.f32 %v542, %v871
        %v893 = vsub.f32 %v891, %v610
        %v894 = vsub.f32 %v892, %v610
        %v895 = vmul.f32 %v893, 1.442695
        %v896 = vpow.pop %v895
        %v897 = vmul.f32 %v894, 1.442695
        %v898 = vpow.pop %v897
        %v899 = vadd.f32 %v896, 0.0001
        %v900 = vadd.f32 %v898, 0.0001
        %v901 = vmul.f32 %v899, 0.25
        %v902 = vmul.f32 %v900, 0.25
        %905 = vrot.lane.b32.xlu0 %v901, 112
        %v906 = vpop.permute.xlu0 %905
        %907 = vrot.lane.b32.xlu0 %v902, 112
        %v908 = vpop.permute.xlu0 %907
        %911 = vxpose.xlu0.b32.start [1/16] %v906, 128
        %912 = vxpose.xlu0.b32.cont [2/16] %v908, 128
        %913 = vxpose.xlu0.b32.cont [3/16] 0.0, 128
        %914 = vxpose.xlu0.b32.cont [4/16] 0.0, 128
        %915 = vxpose.xlu0.b32.cont [5/16] 0.0, 128
        %916 = vxpose.xlu0.b32.cont [6/16] 0.0, 128
        %917 = vxpose.xlu0.b32.cont [7/16] 0.0, 128
        %918 = vxpose.xlu0.b32.cont [8/16] 0.0, 128
        %919 = vxpose.xlu0.b32.cont [9/16] 0.0, 128
        %920 = vxpose.xlu0.b32.cont [10/16] 0.0, 128
        %921 = vxpose.xlu0.b32.cont [11/16] 0.0, 128
        %922 = vxpose.xlu0.b32.cont [12/16] 0.0, 128
        %923 = vxpose.xlu0.b32.cont [13/16] 0.0, 128
        %924 = vxpose.xlu0.b32.cont [14/16] 0.0, 128
        %925 = vxpose.xlu0.b32.cont [15/16] 0.0, 128
        %926 = vxpose.xlu0.b32.end [16/16] 0.0, 128
        %v927 = vpop.trf.xlu0
        %v928 = vpop.trf.xlu0
        %v929 = vpop.trf.xlu0
        %v930 = vpop.trf.xlu0
        %v931 = vpop.trf.xlu0
        %v932 = vpop.trf.xlu0
        %v933 = vpop.trf.xlu0
        %v934 = vpop.trf.xlu0
        %v935 = vpop.trf.xlu0
        %v936 = vpop.trf.xlu0
        %v937 = vpop.trf.xlu0
        %v938 = vpop.trf.xlu0
        %v939 = vpop.trf.xlu0
        %v940 = vpop.trf.xlu0
        %v941 = vpop.trf.xlu0
        %v942 = vpop.trf.xlu0
        %943 = vrot.lane.b32.xlu0 %v367, 56
        %v944 = vpop.permute.xlu0 %943
        %945 = vrot.lane.b32.xlu0 %v372, 56
        %v946 = vpop.permute.xlu0 %945
        %v950 = vsel %vm591, %v927, 0
        %v953 = vsel %vm591, %v928, 0
        %955 = vmatprep.subr.mxu0 0.0
        %956 = vmatpush1.msra.mxu0 %v944
        %957 = vmatprep.subr.mxu0 0.0
        %958 = vmatpush1.msra.mxu0 %v946
        %959 = vmatprep.subr.mxu0 0.0
        %960 = vmatpush1.msra.mxu0 0.0
        %961 = vmatprep.subr.mxu0 0.0
        %962 = vmatpush1.msra.mxu0 0.0
        %963 = vmatprep.subr.mxu0 0.0
        %964 = vmatpush1.msra.mxu0 0.0
        %965 = vmatprep.subr.mxu0 0.0
        %966 = vmatpush1.msra.mxu0 0.0
        %967 = vmatprep.subr.mxu0 0.0
        %968 = vmatpush1.msra.mxu0 0.0
        %969 = vmatprep.subr.mxu0 0.0
        %970 = vmatpush1.msra.mxu0 0.0
        %971 = vmatprep.subr.mxu0 0.0
        %972 = vmatpush1.msra.mxu0 0.0
        %973 = vmatprep.subr.mxu0 0.0
        %974 = vmatpush1.msra.mxu0 0.0
        %975 = vmatprep.subr.mxu0 0.0
        %976 = vmatpush1.msra.mxu0 0.0
        %977 = vmatprep.subr.mxu0 0.0
        %978 = vmatpush1.msra.mxu0 0.0
        %979 = vmatprep.subr.mxu0 0.0
        %980 = vmatpush1.msra.mxu0 0.0
        %981 = vmatprep.subr.mxu0 0.0
        %982 = vmatpush1.msra.mxu0 0.0
        %983 = vmatprep.subr.mxu0 0.0
        %984 = vmatpush1.msra.mxu0 0.0
        %985 = vmatprep.subr.mxu0 0.0
        %986 = vmatpush1.msra.mxu0 0.0
        %987 = vmatprep.subr.mxu0 0.0
        %988 = vmatpush1.msra.mxu0 0.0
        %989 = vmatprep.subr.mxu0 0.0
        %990 = vmatpush1.msra.mxu0 0.0
        %991 = vmatprep.subr.mxu0 0.0
        %992 = vmatpush1.msra.mxu0 0.0
        %993 = vmatprep.subr.mxu0 0.0
        %994 = vmatpush1.msra.mxu0 0.0
        %995 = vmatprep.subr.mxu0 0.0
        %996 = vmatpush1.msra.mxu0 0.0
        %997 = vmatprep.subr.mxu0 0.0
        %998 = vmatpush1.msra.mxu0 0.0
        %999 = vmatprep.subr.mxu0 0.0
        %1000 = vmatpush1.msra.mxu0 0.0
        %1001 = vmatprep.subr.mxu0 0.0
        %1002 = vmatpush1.msra.mxu0 0.0
        %1003 = vmatprep.subr.mxu0 0.0
        %1004 = vmatpush1.msra.mxu0 0.0
        %1005 = vmatprep.subr.mxu0 0.0
        %1006 = vmatpush1.msra.mxu0 0.0
        %1007 = vmatprep.subr.mxu0 0.0
        %1008 = vmatpush1.msra.mxu0 0.0
        %1009 = vmatprep.subr.mxu0 0.0
        %1010 = vmatpush1.msra.mxu0 0.0
        %1011 = vmatprep.subr.mxu0 0.0
        %1012 = vmatpush1.msra.mxu0 0.0
        %1013 = vmatprep.subr.mxu0 0.0
        %1014 = vmatpush1.msra.mxu0 0.0
        %1015 = vmatprep.subr.mxu0 0.0
        %1016 = vmatpush1.msra.mxu0 0.0
        %1017 = vmatprep.subr.mxu0 0.0
        %1018 = vmatpush1.msra.mxu0 0.0
        %1019 = vmatprep.mubr.f32.mxu0 0.0
        %1020 = vmatmul.mubr.f32.gmra.mrb[0].mxu0 %v950
        %v1021 = vpop.f32.mrb[0].mxu0
        %v1022 = vadd.f32 0.0, %v1021
        %v1023 = vpop.f32.mrb[0].mxu0
        %1024 = vmatprep.mubr.f32.mxu0 0.0
        %1025 = vmatmul.mubr.f32.gmra.mrb[0].mxu0 %v953
        %v1026 = vpop.f32.mrb[0].mxu0
        %v1027 = vadd.f32 0.0, %v1026
        %v1028 = vpop.f32.mrb[0].mxu0
        %1029 = vdwg.mxu0
        %v1030 = vsel %vm874, %v901, 0.0
        %v1031 = vsel %vm874, %v902, 0.0
        %v1032 = vadd.f32 %v1030, %v1031
        %v1033 = vrot.slane %v1032, 4
        %v1034 = vadd.f32 %v1032, %v1033
        %v1035 = vrot.slane %v1034, 2
        %v1036 = vadd.f32 %v1034, %v1035
        %v1037 = vrot.slane %v1036, 1
        %v1038 = vadd.f32 %v1036, %v1037
        %v1039 = vmul.f32 %v889, %v1038
        %v1040 = vmul.f32 %v890, %v1038
        %1043 = vrot.lane.b32.xlu0 %v1039, 112
        %v1044 = vpop.permute.xlu0 %1043
        %1045 = vrot.lane.b32.xlu0 %v1040, 112
        %v1046 = vpop.permute.xlu0 %1045
        %v1049 = vsel %vm591, %v1044, 0.0
        %1050 = vadd.xlane.f32.xlu0 %v1049
        %v1051 = vpop.xlane.xlu0 %1050
        %v1052 = vsel %vm591, %v1046, 0.0
        %1053 = vadd.xlane.f32.xlu0 %v1052
        %v1054 = vpop.xlane.xlu0 %1053
        %1057 = vrot.lane.b32.xlu0 %v889, 112
        %v1058 = vpop.permute.xlu0 %1057
        %1059 = vrot.lane.b32.xlu0 %v890, 112
        %v1060 = vpop.permute.xlu0 %1059
        %v1061 = vsel %vm591, %v1058, 0
        %v1063 = vsel %vm591, %v1060, 0
        %1065 = vmatprep.subr.mxu0 0.0
        %1066 = vmatpush1.msra.mxu0 %v1022
        %1067 = vmatprep.subr.mxu0 0.0
        %1068 = vmatpush1.msra.mxu0 %v1027
        %1069 = vmatprep.subr.mxu0 0.0
        %1070 = vmatpush1.msra.mxu0 0.0
        %1071 = vmatprep.subr.mxu0 0.0
        %1072 = vmatpush1.msra.mxu0 0.0
        %1073 = vmatprep.subr.mxu0 0.0
        %1074 = vmatpush1.msra.mxu0 0.0
        %1075 = vmatprep.subr.mxu0 0.0
        %1076 = vmatpush1.msra.mxu0 0.0
        %1077 = vmatprep.subr.mxu0 0.0
        %1078 = vmatpush1.msra.mxu0 0.0
        %1079 = vmatprep.subr.mxu0 0.0
        %1080 = vmatpush1.msra.mxu0 0.0
        %1081 = vmatprep.subr.mxu0 0.0
        %1082 = vmatpush1.msra.mxu0 0.0
        %1083 = vmatprep.subr.mxu0 0.0
        %1084 = vmatpush1.msra.mxu0 0.0
        %1085 = vmatprep.subr.mxu0 0.0
        %1086 = vmatpush1.msra.mxu0 0.0
        %1087 = vmatprep.subr.mxu0 0.0
        %1088 = vmatpush1.msra.mxu0 0.0
        %1089 = vmatprep.subr.mxu0 0.0
        %1090 = vmatpush1.msra.mxu0 0.0
        %1091 = vmatprep.subr.mxu0 0.0
        %1092 = vmatpush1.msra.mxu0 0.0
        %1093 = vmatprep.subr.mxu0 0.0
        %1094 = vmatpush1.msra.mxu0 0.0
        %1095 = vmatprep.subr.mxu0 0.0
        %1096 = vmatpush1.msra.mxu0 0.0
        %1097 = vmatprep.subr.mxu0 0.0
        %1098 = vmatpush1.msra.mxu0 0.0
        %1099 = vmatprep.subr.mxu0 0.0
        %1100 = vmatpush1.msra.mxu0 0.0
        %1101 = vmatprep.subr.mxu0 0.0
        %1102 = vmatpush1.msra.mxu0 0.0
        %1103 = vmatprep.subr.mxu0 0.0
        %1104 = vmatpush1.msra.mxu0 0.0
        %1105 = vmatprep.subr.mxu0 0.0
        %1106 = vmatpush1.msra.mxu0 0.0
        %1107 = vmatprep.subr.mxu0 0.0
        %1108 = vmatpush1.msra.mxu0 0.0
        %1109 = vmatprep.subr.mxu0 0.0
        %1110 = vmatpush1.msra.mxu0 0.0
        %1111 = vmatprep.subr.mxu0 0.0
        %1112 = vmatpush1.msra.mxu0 0.0
        %1113 = vmatprep.subr.mxu0 0.0
        %1114 = vmatpush1.msra.mxu0 0.0
        %1115 = vmatprep.subr.mxu0 0.0
        %1116 = vmatpush1.msra.mxu0 0.0
        %1117 = vmatprep.subr.mxu0 0.0
        %1118 = vmatpush1.msra.mxu0 0.0
        %1119 = vmatprep.subr.mxu0 0.0
        %1120 = vmatpush1.msra.mxu0 0.0
        %1121 = vmatprep.subr.mxu0 0.0
        %1122 = vmatpush1.msra.mxu0 0.0
        %1123 = vmatprep.subr.mxu0 0.0
        %1124 = vmatpush1.msra.mxu0 0.0
        %1125 = vmatprep.subr.mxu0 0.0
        %1126 = vmatpush1.msra.mxu0 0.0
        %1127 = vmatprep.subr.mxu0 0.0
        %1128 = vmatpush1.msra.mxu0 0.0
        %1129 = vmatprep.mubr.f32.mxu0 0.0
        %1130 = vmatmul.mubr.f32.gmra.mrb[0].mxu0 %v1061
        %v1131 = vpop.f32.mrb[0].mxu0
        %v1132 = vadd.f32 0.0, %v1131
        %v1133 = vpop.f32.mrb[0].mxu0
        %1134 = vmatprep.mubr.f32.mxu0 0.0
        %1135 = vmatmul.mubr.f32.gmra.mrb[0].mxu0 %v1063
        %v1136 = vpop.f32.mrb[0].mxu0
        %v1137 = vadd.f32 0.0, %v1136
        %v1138 = vpop.f32.mrb[0].mxu0
        %1139 = vdwg.mxu0
        %v1140 = vrcp.pop %v1051
        %v1141 = vrcp.pop %v1054
        %v1142 = vmul.f32 %v1132, %v1140
        %v1143 = vmul.f32 %v1137, %v1141
        %v1145 = vsel %vm564, %v1142, 0
        %v1148 = vsel %vm564, %v1143, 0
        %1150 = vmatprep.subr.mxu0 0.0
        %1151 = vmatpush1.msra.mxu0 %v559
        %1152 = vmatprep.subr.mxu0 0.0
        %1153 = vmatpush1.msra.mxu0 0.0
        %1154 = vmatprep.subr.mxu0 0.0
        %1155 = vmatpush1.msra.mxu0 0.0
        %1156 = vmatprep.subr.mxu0 0.0
        %1157 = vmatpush1.msra.mxu0 0.0
        %1158 = vmatprep.subr.mxu0 0.0
        %1159 = vmatpush1.msra.mxu0 0.0
        %1160 = vmatprep.subr.mxu0 0.0
        %1161 = vmatpush1.msra.mxu0 0.0
        %1162 = vmatprep.subr.mxu0 0.0
        %1163 = vmatpush1.msra.mxu0 0.0
        %1164 = vmatprep.subr.mxu0 0.0
        %1165 = vmatpush1.msra.mxu0 0.0
        %1166 = vmatprep.subr.mxu0 0.0
        %1167 = vmatpush1.msra.mxu0 0.0
        %1168 = vmatprep.subr.mxu0 0.0
        %1169 = vmatpush1.msra.mxu0 0.0
        %1170 = vmatprep.subr.mxu0 0.0
        %1171 = vmatpush1.msra.mxu0 0.0
        %1172 = vmatprep.subr.mxu0 0.0
        %1173 = vmatpush1.msra.mxu0 0.0
        %1174 = vmatprep.subr.mxu0 0.0
        %1175 = vmatpush1.msra.mxu0 0.0
        %1176 = vmatprep.subr.mxu0 0.0
        %1177 = vmatpush1.msra.mxu0 0.0
        %1178 = vmatprep.subr.mxu0 0.0
        %1179 = vmatpush1.msra.mxu0 0.0
        %1180 = vmatprep.subr.mxu0 0.0
        %1181 = vmatpush1.msra.mxu0 0.0
        %1182 = vmatprep.subr.mxu0 0.0
        %1183 = vmatpush1.msra.mxu0 0.0
        %1184 = vmatprep.subr.mxu0 0.0
        %1185 = vmatpush1.msra.mxu0 0.0
        %1186 = vmatprep.subr.mxu0 0.0
        %1187 = vmatpush1.msra.mxu0 0.0
        %1188 = vmatprep.subr.mxu0 0.0
        %1189 = vmatpush1.msra.mxu0 0.0
        %1190 = vmatprep.subr.mxu0 0.0
        %1191 = vmatpush1.msra.mxu0 0.0
        %1192 = vmatprep.subr.mxu0 0.0
        %1193 = vmatpush1.msra.mxu0 0.0
        %1194 = vmatprep.subr.mxu0 0.0
        %1195 = vmatpush1.msra.mxu0 0.0
        %1196 = vmatprep.subr.mxu0 0.0
        %1197 = vmatpush1.msra.mxu0 0.0
        %1198 = vmatprep.subr.mxu0 0.0
        %1199 = vmatpush1.msra.mxu0 0.0
        %1200 = vmatprep.subr.mxu0 0.0
        %1201 = vmatpush1.msra.mxu0 0.0
        %1202 = vmatprep.subr.mxu0 0.0
        %1203 = vmatpush1.msra.mxu0 0.0
        %1204 = vmatprep.subr.mxu0 0.0
        %1205 = vmatpush1.msra.mxu0 0.0
        %1206 = vmatprep.subr.mxu0 0.0
        %1207 = vmatpush1.msra.mxu0 0.0
        %1208 = vmatprep.subr.mxu0 0.0
        %1209 = vmatpush1.msra.mxu0 0.0
        %1210 = vmatprep.subr.mxu0 0.0
        %1211 = vmatpush1.msra.mxu0 0.0
        %1212 = vmatprep.subr.mxu0 0.0
        %1213 = vmatpush1.msra.mxu0 0.0
        %1214 = vmatprep.mubr.f32.mxu0 0.0
        %1215 = vmatmul.mubr.f32.gmra.mrb[0].mxu0 %v1145
        %v1216 = vpop.f32.mrb[0].mxu0
        %v1217 = vadd.f32 0.0, %v1216
        %v1218 = vpop.f32.mrb[0].mxu0
        %1219 = vmatprep.mubr.f32.mxu0 0.0
        %1220 = vmatmul.mubr.f32.gmra.mrb[0].mxu0 %v1148
        %v1221 = vpop.f32.mrb[0].mxu0
        %v1222 = vadd.f32 0.0, %v1221
        %v1223 = vpop.f32.mrb[0].mxu0
        %1224 = vdwg.mxu0
        %v1226 = vsel %vm564, %v842, 0
        %v1229 = vsel %vm564, %v843, 0
        %1231 = vmatprep.subr.mxu0 0.0
        %1232 = vmatpush1.msra.mxu0 %v558
        %1233 = vmatprep.subr.mxu0 0.0
        %1234 = vmatpush1.msra.mxu0 0.0
        %1235 = vmatprep.subr.mxu0 0.0
        %1236 = vmatpush1.msra.mxu0 0.0
        %1237 = vmatprep.subr.mxu0 0.0
        %1238 = vmatpush1.msra.mxu0 0.0
        %1239 = vmatprep.subr.mxu0 0.0
        %1240 = vmatpush1.msra.mxu0 0.0
        %1241 = vmatprep.subr.mxu0 0.0
        %1242 = vmatpush1.msra.mxu0 0.0
        %1243 = vmatprep.subr.mxu0 0.0
        %1244 = vmatpush1.msra.mxu0 0.0
        %1245 = vmatprep.subr.mxu0 0.0
        %1246 = vmatpush1.msra.mxu0 0.0
        %1247 = vmatprep.subr.mxu0 0.0
        %1248 = vmatpush1.msra.mxu0 0.0
        %1249 = vmatprep.subr.mxu0 0.0
        %1250 = vmatpush1.msra.mxu0 0.0
        %1251 = vmatprep.subr.mxu0 0.0
        %1252 = vmatpush1.msra.mxu0 0.0
        %1253 = vmatprep.subr.mxu0 0.0
        %1254 = vmatpush1.msra.mxu0 0.0
        %1255 = vmatprep.subr.mxu0 0.0
        %1256 = vmatpush1.msra.mxu0 0.0
        %1257 = vmatprep.subr.mxu0 0.0
        %1258 = vmatpush1.msra.mxu0 0.0
        %1259 = vmatprep.subr.mxu0 0.0
        %1260 = vmatpush1.msra.mxu0 0.0
        %1261 = vmatprep.subr.mxu0 0.0
        %1262 = vmatpush1.msra.mxu0 0.0
        %1263 = vmatprep.subr.mxu0 0.0
        %1264 = vmatpush1.msra.mxu0 0.0
        %1265 = vmatprep.subr.mxu0 0.0
        %1266 = vmatpush1.msra.mxu0 0.0
        %1267 = vmatprep.subr.mxu0 0.0
        %1268 = vmatpush1.msra.mxu0 0.0
        %1269 = vmatprep.subr.mxu0 0.0
        %1270 = vmatpush1.msra.mxu0 0.0
        %1271 = vmatprep.subr.mxu0 0.0
        %1272 = vmatpush1.msra.mxu0 0.0
        %1273 = vmatprep.subr.mxu0 0.0
        %1274 = vmatpush1.msra.mxu0 0.0
        %1275 = vmatprep.subr.mxu0 0.0
        %1276 = vmatpush1.msra.mxu0 0.0
        %1277 = vmatprep.subr.mxu0 0.0
        %1278 = vmatpush1.msra.mxu0 0.0
        %1279 = vmatprep.subr.mxu0 0.0
        %1280 = vmatpush1.msra.mxu0 0.0
        %1281 = vmatprep.subr.mxu0 0.0
        %1282 = vmatpush1.msra.mxu0 0.0
        %1283 = vmatprep.subr.mxu0 0.0
        %1284 = vmatpush1.msra.mxu0 0.0
        %1285 = vmatprep.subr.mxu0 0.0
        %1286 = vmatpush1.msra.mxu0 0.0
        %1287 = vmatprep.subr.mxu0 0.0
        %1288 = vmatpush1.msra.mxu0 0.0
        %1289 = vmatprep.subr.mxu0 0.0
        %1290 = vmatpush1.msra.mxu0 0.0
        %1291 = vmatprep.subr.mxu0 0.0
        %1292 = vmatpush1.msra.mxu0 0.0
        %1293 = vmatprep.subr.mxu0 0.0
        %1294 = vmatpush1.msra.mxu0 0.0
        %1295 = vmatprep.mubr.f32.mxu0 0.0
        %1296 = vmatmul.mubr.f32.gmra.mrb[0].mxu0 %v1226
        %v1297 = vpop.f32.mrb[0].mxu0
        %v1298 = vadd.f32 %v1217, %v1297
        %v1299 = vpop.f32.mrb[0].mxu0
        %1300 = vmatprep.mubr.f32.mxu0 0.0
        %1301 = vmatmul.mubr.f32.gmra.mrb[0].mxu0 %v1229
        %v1302 = vpop.f32.mrb[0].mxu0
        %v1303 = vadd.f32 %v1222, %v1302
        %v1304 = vpop.f32.mrb[0].mxu0
        %1305 = vdwg.mxu0
        %1306 = vrot.lane.b32.xlu0 %v562, 112
        %v1307 = vpop.permute.xlu0 %1306
        %1308 = vrot.lane.b32.xlu0 %v563, 112
        %v1309 = vpop.permute.xlu0 %1308
        %v1312 = vsel %vm564, %v1307, 0.0
        %1313 = vadd.xlane.f32.xlu0 %v1312
        %v1314 = vpop.xlane.xlu0 %1313
        %v1315 = vsel %vm564, %v1309, 0.0
        %1316 = vadd.xlane.f32.xlu0 %v1315
        %v1317 = vpop.xlane.xlu0 %1316
        %v1318 = vmul.f32 %v1314, 0.5
        %v1319 = vmul.f32 %v1317, 0.5
        %1320 = vrot.lane.b32.xlu0 %v562, 80
        %v1321 = vpop.permute.xlu0 %1320
        %1322 = vrot.lane.b32.xlu0 %v563, 80
        %v1323 = vpop.permute.xlu0 %1322
        %v1326 = vsel %vm564, %v1321, 0.0
        %1327 = vadd.xlane.f32.xlu0 %v1326
        %v1328 = vpop.xlane.xlu0 %1327
        %v1329 = vsel %vm564, %v1323, 0.0
        %1330 = vadd.xlane.f32.xlu0 %v1329
        %v1331 = vpop.xlane.xlu0 %1330
        %v1332 = vmul.f32 %v1328, 0.5
        %v1333 = vmul.f32 %v1331, 0.5
        %v1334 = vsub.f32 %v454, %v1318
        %v1335 = vsub.f32 %v459, %v1319
        %vm1336 = vcmask 392448
        %v1337 = vsel %vm1336, %v454, -inf
        %1338 = vmax.xlane.f32.xlu0 %v1337
        %v1339 = vpop.xlane.xlu0 %1338
        %v1340 = vsel %vm1336, %v459, -inf
        %1341 = vmax.xlane.f32.xlu0 %v1340
        %v1342 = vpop.xlane.xlu0 %1341
        %v1343 = vsub.f32 %v1334, %v1339
        %v1344 = vsub.f32 %v1335, %v1342
        %v1345 = vmul.f32 %v1343, 1.442695
        %v1346 = vpow.pop %v1345
        %v1347 = vmul.f32 %v1344, 1.442695
        %v1348 = vpow.pop %v1347
        %v1349 = vadd.f32 %v1346, 0.0001
        %v1350 = vadd.f32 %v1348, 0.0001
        %v1351 = vmul.f32 %v1349, 0.25
        %v1352 = vmul.f32 %v1350, 0.25
        %v1353 = vsub.f32 %v537, %v1332
        %v1354 = vsub.f32 %v542, %v1333
        %v1355 = vsub.f32 %v1353, %v610
        %v1356 = vsub.f32 %v1354, %v610
        %v1357 = vmul.f32 %v1355, 1.442695
        %v1358 = vpow.pop %v1357
        %v1359 = vmul.f32 %v1356, 1.442695
        %v1360 = vpow.pop %v1359
        %v1361 = vadd.f32 %v1358, 0.0001
        %v1362 = vadd.f32 %v1360, 0.0001
        %v1363 = vmul.f32 %v1361, 0.25
        %v1364 = vmul.f32 %v1362, 0.25
        %1367 = vrot.lane.b32.xlu0 %v1363, 96
        %v1368 = vpop.permute.xlu0 %1367
        %1369 = vrot.lane.b32.xlu0 %v1364, 96
        %v1370 = vpop.permute.xlu0 %1369
        %1373 = vxpose.xlu0.b32.start [1/16] %v1368, 128
        %1374 = vxpose.xlu0.b32.cont [2/16] %v1370, 128
        %1375 = vxpose.xlu0.b32.cont [3/16] 0.0, 128
        %1376 = vxpose.xlu0.b32.cont [4/16] 0.0, 128
        %1377 = vxpose.xlu0.b32.cont [5/16] 0.0, 128
        %1378 = vxpose.xlu0.b32.cont [6/16] 0.0, 128
        %1379 = vxpose.xlu0.b32.cont [7/16] 0.0, 128
        %1380 = vxpose.xlu0.b32.cont [8/16] 0.0, 128
        %1381 = vxpose.xlu0.b32.cont [9/16] 0.0, 128
        %1382 = vxpose.xlu0.b32.cont [10/16] 0.0, 128
        %1383 = vxpose.xlu0.b32.cont [11/16] 0.0, 128
        %1384 = vxpose.xlu0.b32.cont [12/16] 0.0, 128
        %1385 = vxpose.xlu0.b32.cont [13/16] 0.0, 128
        %1386 = vxpose.xlu0.b32.cont [14/16] 0.0, 128
        %1387 = vxpose.xlu0.b32.cont [15/16] 0.0, 128
        %1388 = vxpose.xlu0.b32.end [16/16] 0.0, 128
        %v1389 = vpop.trf.xlu0
        %v1390 = vpop.trf.xlu0
        %v1391 = vpop.trf.xlu0
        %v1392 = vpop.trf.xlu0
        %v1393 = vpop.trf.xlu0
        %v1394 = vpop.trf.xlu0
        %v1395 = vpop.trf.xlu0
        %v1396 = vpop.trf.xlu0
        %v1397 = vpop.trf.xlu0
        %v1398 = vpop.trf.xlu0
        %v1399 = vpop.trf.xlu0
        %v1400 = vpop.trf.xlu0
        %v1401 = vpop.trf.xlu0
        %v1402 = vpop.trf.xlu0
        %v1403 = vpop.trf.xlu0
        %v1404 = vpop.trf.xlu0
        %1405 = vrot.lane.b32.xlu0 %v367, 48
        %v1406 = vpop.permute.xlu0 %1405
        %1407 = vrot.lane.b32.xlu0 %v372, 48
        %v1408 = vpop.permute.xlu0 %1407
        %v1412 = vsel %vm591, %v1389, 0
        %v1415 = vsel %vm591, %v1390, 0
        %1417 = vmatprep.subr.mxu0 0.0
        %1418 = vmatpush1.msra.mxu0 %v1406
        %1419 = vmatprep.subr.mxu0 0.0
        %1420 = vmatpush1.msra.mxu0 %v1408
        %1421 = vmatprep.subr.mxu0 0.0
        %1422 = vmatpush1.msra.mxu0 0.0
        %1423 = vmatprep.subr.mxu0 0.0
        %1424 = vmatpush1.msra.mxu0 0.0
        %1425 = vmatprep.subr.mxu0 0.0
        %1426 = vmatpush1.msra.mxu0 0.0
        %1427 = vmatprep.subr.mxu0 0.0
        %1428 = vmatpush1.msra.mxu0 0.0
        %1429 = vmatprep.subr.mxu0 0.0
        %1430 = vmatpush1.msra.mxu0 0.0
        %1431 = vmatprep.subr.mxu0 0.0
        %1432 = vmatpush1.msra.mxu0 0.0
        %1433 = vmatprep.subr.mxu0 0.0
        %1434 = vmatpush1.msra.mxu0 0.0
        %1435 = vmatprep.subr.mxu0 0.0
        %1436 = vmatpush1.msra.mxu0 0.0
        %1437 = vmatprep.subr.mxu0 0.0
        %1438 = vmatpush1.msra.mxu0 0.0
        %1439 = vmatprep.subr.mxu0 0.0
        %1440 = vmatpush1.msra.mxu0 0.0
        %1441 = vmatprep.subr.mxu0 0.0
        %1442 = vmatpush1.msra.mxu0 0.0
        %1443 = vmatprep.subr.mxu0 0.0
        %1444 = vmatpush1.msra.mxu0 0.0
        %1445 = vmatprep.subr.mxu0 0.0
        %1446 = vmatpush1.msra.mxu0 0.0
        %1447 = vmatprep.subr.mxu0 0.0
        %1448 = vmatpush1.msra.mxu0 0.0
        %1449 = vmatprep.subr.mxu0 0.0
        %1450 = vmatpush1.msra.mxu0 0.0
        %1451 = vmatprep.subr.mxu0 0.0
        %1452 = vmatpush1.msra.mxu0 0.0
        %1453 = vmatprep.subr.mxu0 0.0
        %1454 = vmatpush1.msra.mxu0 0.0
        %1455 = vmatprep.subr.mxu0 0.0
        %1456 = vmatpush1.msra.mxu0 0.0
        %1457 = vmatprep.subr.mxu0 0.0
        %1458 = vmatpush1.msra.mxu0 0.0
        %1459 = vmatprep.subr.mxu0 0.0
        %1460 = vmatpush1.msra.mxu0 0.0
        %1461 = vmatprep.subr.mxu0 0.0
        %1462 = vmatpush1.msra.mxu0 0.0
        %1463 = vmatprep.subr.mxu0 0.0
        %1464 = vmatpush1.msra.mxu0 0.0
        %1465 = vmatprep.subr.mxu0 0.0
        %1466 = vmatpush1.msra.mxu0 0.0
        %1467 = vmatprep.subr.mxu0 0.0
        %1468 = vmatpush1.msra.mxu0 0.0
        %1469 = vmatprep.subr.mxu0 0.0
        %1470 = vmatpush1.msra.mxu0 0.0
        %1471 = vmatprep.subr.mxu0 0.0
        %1472 = vmatpush1.msra.mxu0 0.0
        %1473 = vmatprep.subr.mxu0 0.0
        %1474 = vmatpush1.msra.mxu0 0.0
        %1475 = vmatprep.subr.mxu0 0.0
        %1476 = vmatpush1.msra.mxu0 0.0
        %1477 = vmatprep.subr.mxu0 0.0
        %1478 = vmatpush1.msra.mxu0 0.0
        %1479 = vmatprep.subr.mxu0 0.0
        %1480 = vmatpush1.msra.mxu0 0.0
        %1481 = vmatprep.mubr.f32.mxu0 0.0
        %1482 = vmatmul.mubr.f32.gmra.mrb[0].mxu0 %v1412
        %v1483 = vpop.f32.mrb[0].mxu0
        %v1484 = vadd.f32 0.0, %v1483
        %v1485 = vpop.f32.mrb[0].mxu0
        %1486 = vmatprep.mubr.f32.mxu0 0.0
        %1487 = vmatmul.mubr.f32.gmra.mrb[0].mxu0 %v1415
        %v1488 = vpop.f32.mrb[0].mxu0
        %v1489 = vadd.f32 0.0, %v1488
        %v1490 = vpop.f32.mrb[0].mxu0
        %1491 = vdwg.mxu0
        %v1492 = vsel %vm1336, %v1363, 0.0
        %v1493 = vsel %vm1336, %v1364, 0.0
        %v1494 = vadd.f32 %v1492, %v1493
        %v1495 = vrot.slane %v1494, 4
        %v1496 = vadd.f32 %v1494, %v1495
        %v1497 = vrot.slane %v1496, 2
        %v1498 = vadd.f32 %v1496, %v1497
        %v1499 = vrot.slane %v1498, 1
        %v1500 = vadd.f32 %v1498, %v1499
        %v1501 = vmul.f32 %v1351, %v1500
        %v1502 = vmul.f32 %v1352, %v1500
        %1505 = vrot.lane.b32.xlu0 %v1501, 96
        %v1506 = vpop.permute.xlu0 %1505
        %1507 = vrot.lane.b32.xlu0 %v1502, 96
        %v1508 = vpop.permute.xlu0 %1507
        %v1511 = vsel %vm591, %v1506, 0.0
        %1512 = vadd.xlane.f32.xlu0 %v1511
        %v1513 = vpop.xlane.xlu0 %1512
        %v1514 = vsel %vm591, %v1508, 0.0
        %1515 = vadd.xlane.f32.xlu0 %v1514
        %v1516 = vpop.xlane.xlu0 %1515
        %1519 = vrot.lane.b32.xlu0 %v1351, 96
        %v1520 = vpop.permute.xlu0 %1519
        %1521 = vrot.lane.b32.xlu0 %v1352, 96
        %v1522 = vpop.permute.xlu0 %1521
        %v1523 = vsel %vm591, %v1520, 0
        %v1525 = vsel %vm591, %v1522, 0
        %1527 = vmatprep.subr.mxu0 0.0
        %1528 = vmatpush1.msra.mxu0 %v1484
        %1529 = vmatprep.subr.mxu0 0.0
        %1530 = vmatpush1.msra.mxu0 %v1489
        %1531 = vmatprep.subr.mxu0 0.0
        %1532 = vmatpush1.msra.mxu0 0.0
        %1533 = vmatprep.subr.mxu0 0.0
        %1534 = vmatpush1.msra.mxu0 0.0
        %1535 = vmatprep.subr.mxu0 0.0
        %1536 = vmatpush1.msra.mxu0 0.0
        %1537 = vmatprep.subr.mxu0 0.0
        %1538 = vmatpush1.msra.mxu0 0.0
        %1539 = vmatprep.subr.mxu0 0.0
        %1540 = vmatpush1.msra.mxu0 0.0
        %1541 = vmatprep.subr.mxu0 0.0
        %1542 = vmatpush1.msra.mxu0 0.0
        %1543 = vmatprep.subr.mxu0 0.0
        %1544 = vmatpush1.msra.mxu0 0.0
        %1545 = vmatprep.subr.mxu0 0.0
        %1546 = vmatpush1.msra.mxu0 0.0
        %1547 = vmatprep.subr.mxu0 0.0
        %1548 = vmatpush1.msra.mxu0 0.0
        %1549 = vmatprep.subr.mxu0 0.0
        %1550 = vmatpush1.msra.mxu0 0.0
        %1551 = vmatprep.subr.mxu0 0.0
        %1552 = vmatpush1.msra.mxu0 0.0
        %1553 = vmatprep.subr.mxu0 0.0
        %1554 = vmatpush1.msra.mxu0 0.0
        %1555 = vmatprep.subr.mxu0 0.0
        %1556 = vmatpush1.msra.mxu0 0.0
        %1557 = vmatprep.subr.mxu0 0.0
        %1558 = vmatpush1.msra.mxu0 0.0
        %1559 = vmatprep.subr.mxu0 0.0
        %1560 = vmatpush1.msra.mxu0 0.0
        %1561 = vmatprep.subr.mxu0 0.0
        %1562 = vmatpush1.msra.mxu0 0.0
        %1563 = vmatprep.subr.mxu0 0.0
        %1564 = vmatpush1.msra.mxu0 0.0
        %1565 = vmatprep.subr.mxu0 0.0
        %1566 = vmatpush1.msra.mxu0 0.0
        %1567 = vmatprep.subr.mxu0 0.0
        %1568 = vmatpush1.msra.mxu0 0.0
        %1569 = vmatprep.subr.mxu0 0.0
        %1570 = vmatpush1.msra.mxu0 0.0
        %1571 = vmatprep.subr.mxu0 0.0
        %1572 = vmatpush1.msra.mxu0 0.0
        %1573 = vmatprep.subr.mxu0 0.0
        %1574 = vmatpush1.msra.mxu0 0.0
        %1575 = vmatprep.subr.mxu0 0.0
        %1576 = vmatpush1.msra.mxu0 0.0
        %1577 = vmatprep.subr.mxu0 0.0
        %1578 = vmatpush1.msra.mxu0 0.0
        %1579 = vmatprep.subr.mxu0 0.0
        %1580 = vmatpush1.msra.mxu0 0.0
        %1581 = vmatprep.subr.mxu0 0.0
        %1582 = vmatpush1.msra.mxu0 0.0
        %1583 = vmatprep.subr.mxu0 0.0
        %1584 = vmatpush1.msra.mxu0 0.0
        %1585 = vmatprep.subr.mxu0 0.0
        %1586 = vmatpush1.msra.mxu0 0.0
        %1587 = vmatprep.subr.mxu0 0.0
        %1588 = vmatpush1.msra.mxu0 0.0
        %1589 = vmatprep.subr.mxu0 0.0
        %1590 = vmatpush1.msra.mxu0 0.0
        %1591 = vmatprep.mubr.f32.mxu0 0.0
        %1592 = vmatmul.mubr.f32.gmra.mrb[0].mxu0 %v1523
        %v1593 = vpop.f32.mrb[0].mxu0
        %v1594 = vadd.f32 0.0, %v1593
        %v1595 = vpop.f32.mrb[0].mxu0
        %1596 = vmatprep.mubr.f32.mxu0 0.0
        %1597 = vmatmul.mubr.f32.gmra.mrb[0].mxu0 %v1525
        %v1598 = vpop.f32.mrb[0].mxu0
        %v1599 = vadd.f32 0.0, %v1598
        %v1600 = vpop.f32.mrb[0].mxu0
        %1601 = vdwg.mxu0
        %v1602 = vrcp.pop %v1513
        %v1603 = vrcp.pop %v1516
        %v1604 = vmul.f32 %v1594, %v1602
        %v1605 = vmul.f32 %v1599, %v1603
        %v1607 = vsel %vm564, %v1604, 0
        %v1610 = vsel %vm564, %v1605, 0
        %1612 = vmatprep.subr.mxu0 0.0
        %1613 = vmatpush1.msra.mxu0 %v560
        %1614 = vmatprep.subr.mxu0 0.0
        %1615 = vmatpush1.msra.mxu0 0.0
        %1616 = vmatprep.subr.mxu0 0.0
        %1617 = vmatpush1.msra.mxu0 0.0
        %1618 = vmatprep.subr.mxu0 0.0
        %1619 = vmatpush1.msra.mxu0 0.0
        %1620 = vmatprep.subr.mxu0 0.0
        %1621 = vmatpush1.msra.mxu0 0.0
        %1622 = vmatprep.subr.mxu0 0.0
        %1623 = vmatpush1.msra.mxu0 0.0
        %1624 = vmatprep.subr.mxu0 0.0
        %1625 = vmatpush1.msra.mxu0 0.0
        %1626 = vmatprep.subr.mxu0 0.0
        %1627 = vmatpush1.msra.mxu0 0.0
        %1628 = vmatprep.subr.mxu0 0.0
        %1629 = vmatpush1.msra.mxu0 0.0
        %1630 = vmatprep.subr.mxu0 0.0
        %1631 = vmatpush1.msra.mxu0 0.0
        %1632 = vmatprep.subr.mxu0 0.0
        %1633 = vmatpush1.msra.mxu0 0.0
        %1634 = vmatprep.subr.mxu0 0.0
        %1635 = vmatpush1.msra.mxu0 0.0
        %1636 = vmatprep.subr.mxu0 0.0
        %1637 = vmatpush1.msra.mxu0 0.0
        %1638 = vmatprep.subr.mxu0 0.0
        %1639 = vmatpush1.msra.mxu0 0.0
        %1640 = vmatprep.subr.mxu0 0.0
        %1641 = vmatpush1.msra.mxu0 0.0
        %1642 = vmatprep.subr.mxu0 0.0
        %1643 = vmatpush1.msra.mxu0 0.0
        %1644 = vmatprep.subr.mxu0 0.0
        %1645 = vmatpush1.msra.mxu0 0.0
        %1646 = vmatprep.subr.mxu0 0.0
        %1647 = vmatpush1.msra.mxu0 0.0
        %1648 = vmatprep.subr.mxu0 0.0
        %1649 = vmatpush1.msra.mxu0 0.0
        %1650 = vmatprep.subr.mxu0 0.0
        %1651 = vmatpush1.msra.mxu0 0.0
        %1652 = vmatprep.subr.mxu0 0.0
        %1653 = vmatpush1.msra.mxu0 0.0
        %1654 = vmatprep.subr.mxu0 0.0
        %1655 = vmatpush1.msra.mxu0 0.0
        %1656 = vmatprep.subr.mxu0 0.0
        %1657 = vmatpush1.msra.mxu0 0.0
        %1658 = vmatprep.subr.mxu0 0.0
        %1659 = vmatpush1.msra.mxu0 0.0
        %1660 = vmatprep.subr.mxu0 0.0
        %1661 = vmatpush1.msra.mxu0 0.0
        %1662 = vmatprep.subr.mxu0 0.0
        %1663 = vmatpush1.msra.mxu0 0.0
        %1664 = vmatprep.subr.mxu0 0.0
        %1665 = vmatpush1.msra.mxu0 0.0
        %1666 = vmatprep.subr.mxu0 0.0
        %1667 = vmatpush1.msra.mxu0 0.0
        %1668 = vmatprep.subr.mxu0 0.0
        %1669 = vmatpush1.msra.mxu0 0.0
        %1670 = vmatprep.subr.mxu0 0.0
        %1671 = vmatpush1.msra.mxu0 0.0
        %1672 = vmatprep.subr.mxu0 0.0
        %1673 = vmatpush1.msra.mxu0 0.0
        %1674 = vmatprep.subr.mxu0 0.0
        %1675 = vmatpush1.msra.mxu0 0.0
        %1676 = vmatprep.mubr.f32.mxu0 0.0
        %1677 = vmatmul.mubr.f32.gmra.mrb[0].mxu0 %v1607
        %v1678 = vpop.f32.mrb[0].mxu0
        %v1679 = vadd.f32 0.0, %v1678
        %v1680 = vpop.f32.mrb[0].mxu0
        %1681 = vmatprep.mubr.f32.mxu0 0.0
        %1682 = vmatmul.mubr.f32.gmra.mrb[0].mxu0 %v1610
        %v1683 = vpop.f32.mrb[0].mxu0
        %v1684 = vadd.f32 0.0, %v1683
        %v1685 = vpop.f32.mrb[0].mxu0
        %1686 = vdwg.mxu0
        %v1687 = vadd.f32 %v1298, %v1679
        %v1688 = vadd.f32 %v1303, %v1684
        %1689 = vrot.lane.b32.xlu0 %v562, 104
        %v1690 = vpop.permute.xlu0 %1689
        %1691 = vrot.lane.b32.xlu0 %v563, 104
        %v1692 = vpop.permute.xlu0 %1691
        %v1695 = vsel %vm564, %v1690, 0.0
        %1696 = vadd.xlane.f32.xlu0 %v1695
        %v1697 = vpop.xlane.xlu0 %1696
        %v1698 = vsel %vm564, %v1692, 0.0
        %1699 = vadd.xlane.f32.xlu0 %v1698
        %v1700 = vpop.xlane.xlu0 %1699
        %v1701 = vmul.f32 %v1697, 0.5
        %v1702 = vmul.f32 %v1700, 0.5
        %1703 = vrot.lane.b32.xlu0 %v562, 72
        %v1704 = vpop.permute.xlu0 %1703
        %1705 = vrot.lane.b32.xlu0 %v563, 72
        %v1706 = vpop.permute.xlu0 %1705
        %v1709 = vsel %vm564, %v1704, 0.0
        %1710 = vadd.xlane.f32.xlu0 %v1709
        %v1711 = vpop.xlane.xlu0 %1710
        %v1712 = vsel %vm564, %v1706, 0.0
        %1713 = vadd.xlane.f32.xlu0 %v1712
        %v1714 = vpop.xlane.xlu0 %1713
        %v1715 = vmul.f32 %v1711, 0.5
        %v1716 = vmul.f32 %v1714, 0.5
        %v1717 = vsub.f32 %v454, %v1701
        %v1718 = vsub.f32 %v459, %v1702
        %vm1719 = vcmask 523648
        %v1720 = vsel %vm1719, %v454, -inf
        %1721 = vmax.xlane.f32.xlu0 %v1720
        %v1722 = vpop.xlane.xlu0 %1721
        %v1723 = vsel %vm1719, %v459, -inf
        %1724 = vmax.xlane.f32.xlu0 %v1723
        %v1725 = vpop.xlane.xlu0 %1724
        %v1726 = vsub.f32 %v1717, %v1722
        %v1727 = vsub.f32 %v1718, %v1725
        %v1728 = vmul.f32 %v1726, 1.442695
        %v1729 = vpow.pop %v1728
        %v1730 = vmul.f32 %v1727, 1.442695
        %v1731 = vpow.pop %v1730
        %v1732 = vadd.f32 %v1729, 0.0001
        %v1733 = vadd.f32 %v1731, 0.0001
        %v1734 = vmul.f32 %v1732, 0.25
        %v1735 = vmul.f32 %v1733, 0.25
        %v1736 = vsub.f32 %v537, %v1715
        %v1737 = vsub.f32 %v542, %v1716
        %v1738 = vsub.f32 %v1736, %v610
        %v1739 = vsub.f32 %v1737, %v610
        %v1740 = vmul.f32 %v1738, 1.442695
        %v1741 = vpow.pop %v1740
        %v1742 = vmul.f32 %v1739, 1.442695
        %v1743 = vpow.pop %v1742
        %v1744 = vadd.f32 %v1741, 0.0001
        %v1745 = vadd.f32 %v1743, 0.0001
        %v1746 = vmul.f32 %v1744, 0.25
        %v1747 = vmul.f32 %v1745, 0.25
        %1750 = vrot.lane.b32.xlu0 %v1746, 80
        %v1751 = vpop.permute.xlu0 %1750
        %1752 = vrot.lane.b32.xlu0 %v1747, 80
        %v1753 = vpop.permute.xlu0 %1752
        %1756 = vxpose.xlu0.b32.start [1/16] %v1751, 128
        %1757 = vxpose.xlu0.b32.cont [2/16] %v1753, 128
        %1758 = vxpose.xlu0.b32.cont [3/16] 0.0, 128
        %1759 = vxpose.xlu0.b32.cont [4/16] 0.0, 128
        %1760 = vxpose.xlu0.b32.cont [5/16] 0.0, 128
        %1761 = vxpose.xlu0.b32.cont [6/16] 0.0, 128
        %1762 = vxpose.xlu0.b32.cont [7/16] 0.0, 128
        %1763 = vxpose.xlu0.b32.cont [8/16] 0.0, 128
        %1764 = vxpose.xlu0.b32.cont [9/16] 0.0, 128
        %1765 = vxpose.xlu0.b32.cont [10/16] 0.0, 128
        %1766 = vxpose.xlu0.b32.cont [11/16] 0.0, 128
        %1767 = vxpose.xlu0.b32.cont [12/16] 0.0, 128
        %1768 = vxpose.xlu0.b32.cont [13/16] 0.0, 128
        %1769 = vxpose.xlu0.b32.cont [14/16] 0.0, 128
        %1770 = vxpose.xlu0.b32.cont [15/16] 0.0, 128
        %1771 = vxpose.xlu0.b32.end [16/16] 0.0, 128
        %v1772 = vpop.trf.xlu0
        %v1773 = vpop.trf.xlu0
        %v1774 = vpop.trf.xlu0
        %v1775 = vpop.trf.xlu0
        %v1776 = vpop.trf.xlu0
        %v1777 = vpop.trf.xlu0
        %v1778 = vpop.trf.xlu0
        %v1779 = vpop.trf.xlu0
        %v1780 = vpop.trf.xlu0
        %v1781 = vpop.trf.xlu0
        %v1782 = vpop.trf.xlu0
        %v1783 = vpop.trf.xlu0
        %v1784 = vpop.trf.xlu0
        %v1785 = vpop.trf.xlu0
        %v1786 = vpop.trf.xlu0
        %v1787 = vpop.trf.xlu0
        %1788 = vrot.lane.b32.xlu0 %v367, 40
        %v1789 = vpop.permute.xlu0 %1788
        %1790 = vrot.lane.b32.xlu0 %v372, 40
        %v1791 = vpop.permute.xlu0 %1790
        %v1795 = vsel %vm591, %v1772, 0
        %v1798 = vsel %vm591, %v1773, 0
        %1800 = vmatprep.subr.mxu0 0.0
        %1801 = vmatpush1.msra.mxu0 %v1789
        %1802 = vmatprep.subr.mxu0 0.0
        %1803 = vmatpush1.msra.mxu0 %v1791
        %1804 = vmatprep.subr.mxu0 0.0
        %1805 = vmatpush1.msra.mxu0 0.0
        %1806 = vmatprep.subr.mxu0 0.0
        %1807 = vmatpush1.msra.mxu0 0.0
        %1808 = vmatprep.subr.mxu0 0.0
        %1809 = vmatpush1.msra.mxu0 0.0
        %1810 = vmatprep.subr.mxu0 0.0
        %1811 = vmatpush1.msra.mxu0 0.0
        %1812 = vmatprep.subr.mxu0 0.0
        %1813 = vmatpush1.msra.mxu0 0.0
        %1814 = vmatprep.subr.mxu0 0.0
        %1815 = vmatpush1.msra.mxu0 0.0
        %1816 = vmatprep.subr.mxu0 0.0
        %1817 = vmatpush1.msra.mxu0 0.0
        %1818 = vmatprep.subr.mxu0 0.0
        %1819 = vmatpush1.msra.mxu0 0.0
        %1820 = vmatprep.subr.mxu0 0.0
        %1821 = vmatpush1.msra.mxu0 0.0
        %1822 = vmatprep.subr.mxu0 0.0
        %1823 = vmatpush1.msra.mxu0 0.0
        %1824 = vmatprep.subr.mxu0 0.0
        %1825 = vmatpush1.msra.mxu0 0.0
        %1826 = vmatprep.subr.mxu0 0.0
        %1827 = vmatpush1.msra.mxu0 0.0
        %1828 = vmatprep.subr.mxu0 0.0
        %1829 = vmatpush1.msra.mxu0 0.0
        %1830 = vmatprep.subr.mxu0 0.0
        %1831 = vmatpush1.msra.mxu0 0.0
        %1832 = vmatprep.subr.mxu0 0.0
        %1833 = vmatpush1.msra.mxu0 0.0
        %1834 = vmatprep.subr.mxu0 0.0
        %1835 = vmatpush1.msra.mxu0 0.0
        %1836 = vmatprep.subr.mxu0 0.0
        %1837 = vmatpush1.msra.mxu0 0.0
        %1838 = vmatprep.subr.mxu0 0.0
        %1839 = vmatpush1.msra.mxu0 0.0
        %1840 = vmatprep.subr.mxu0 0.0
        %1841 = vmatpush1.msra.mxu0 0.0
        %1842 = vmatprep.subr.mxu0 0.0
        %1843 = vmatpush1.msra.mxu0 0.0
        %1844 = vmatprep.subr.mxu0 0.0
        %1845 = vmatpush1.msra.mxu0 0.0
        %1846 = vmatprep.subr.mxu0 0.0
        %1847 = vmatpush1.msra.mxu0 0.0
        %1848 = vmatprep.subr.mxu0 0.0
        %1849 = vmatpush1.msra.mxu0 0.0
        %1850 = vmatprep.subr.mxu0 0.0
        %1851 = vmatpush1.msra.mxu0 0.0
        %1852 = vmatprep.subr.mxu0 0.0
        %1853 = vmatpush1.msra.mxu0 0.0
        %1854 = vmatprep.subr.mxu0 0.0
        %1855 = vmatpush1.msra.mxu0 0.0
        %1856 = vmatprep.subr.mxu0 0.0
        %1857 = vmatpush1.msra.mxu0 0.0
        %1858 = vmatprep.subr.mxu0 0.0
        %1859 = vmatpush1.msra.mxu0 0.0
        %1860 = vmatprep.subr.mxu0 0.0
        %1861 = vmatpush1.msra.mxu0 0.0
        %1862 = vmatprep.subr.mxu0 0.0
        %1863 = vmatpush1.msra.mxu0 0.0
        %1864 = vmatprep.mubr.f32.mxu0 0.0
        %1865 = vmatmul.mubr.f32.gmra.mrb[0].mxu0 %v1795
        %v1866 = vpop.f32.mrb[0].mxu0
        %v1867 = vadd.f32 0.0, %v1866
        %v1868 = vpop.f32.mrb[0].mxu0
        %1869 = vmatprep.mubr.f32.mxu0 0.0
        %1870 = vmatmul.mubr.f32.gmra.mrb[0].mxu0 %v1798
        %v1871 = vpop.f32.mrb[0].mxu0
        %v1872 = vadd.f32 0.0, %v1871
        %v1873 = vpop.f32.mrb[0].mxu0
        %1874 = vdwg.mxu0
        %v1875 = vsel %vm1719, %v1746, 0.0
        %v1876 = vsel %vm1719, %v1747, 0.0
        %v1877 = vadd.f32 %v1875, %v1876
        %v1878 = vrot.slane %v1877, 4
        %v1879 = vadd.f32 %v1877, %v1878
        %v1880 = vrot.slane %v1879, 2
        %v1881 = vadd.f32 %v1879, %v1880
        %v1882 = vrot.slane %v1881, 1
        %v1883 = vadd.f32 %v1881, %v1882
        %v1884 = vmul.f32 %v1734, %v1883
        %v1885 = vmul.f32 %v1735, %v1883
        %1888 = vrot.lane.b32.xlu0 %v1884, 80
        %v1889 = vpop.permute.xlu0 %1888
        %1890 = vrot.lane.b32.xlu0 %v1885, 80
        %v1891 = vpop.permute.xlu0 %1890
        %v1894 = vsel %vm591, %v1889, 0.0
        %1895 = vadd.xlane.f32.xlu0 %v1894
        %v1896 = vpop.xlane.xlu0 %1895
        %v1897 = vsel %vm591, %v1891, 0.0
        %1898 = vadd.xlane.f32.xlu0 %v1897
        %v1899 = vpop.xlane.xlu0 %1898
        %1902 = vrot.lane.b32.xlu0 %v1734, 80
        %v1903 = vpop.permute.xlu0 %1902
        %1904 = vrot.lane.b32.xlu0 %v1735, 80
        %v1905 = vpop.permute.xlu0 %1904
        %v1906 = vsel %vm591, %v1903, 0
        %v1908 = vsel %vm591, %v1905, 0
        %1910 = vmatprep.subr.mxu0 0.0
        %1911 = vmatpush1.msra.mxu0 %v1867
        %1912 = vmatprep.subr.mxu0 0.0
        %1913 = vmatpush1.msra.mxu0 %v1872
        %1914 = vmatprep.subr.mxu0 0.0
        %1915 = vmatpush1.msra.mxu0 0.0
        %1916 = vmatprep.subr.mxu0 0.0
        %1917 = vmatpush1.msra.mxu0 0.0
        %1918 = vmatprep.subr.mxu0 0.0
        %1919 = vmatpush1.msra.mxu0 0.0
        %1920 = vmatprep.subr.mxu0 0.0
        %1921 = vmatpush1.msra.mxu0 0.0
        %1922 = vmatprep.subr.mxu0 0.0
        %1923 = vmatpush1.msra.mxu0 0.0
        %1924 = vmatprep.subr.mxu0 0.0
        %1925 = vmatpush1.msra.mxu0 0.0
        %1926 = vmatprep.subr.mxu0 0.0
        %1927 = vmatpush1.msra.mxu0 0.0
        %1928 = vmatprep.subr.mxu0 0.0
        %1929 = vmatpush1.msra.mxu0 0.0
        %1930 = vmatprep.subr.mxu0 0.0
        %1931 = vmatpush1.msra.mxu0 0.0
        %1932 = vmatprep.subr.mxu0 0.0
        %1933 = vmatpush1.msra.mxu0 0.0
        %1934 = vmatprep.subr.mxu0 0.0
        %1935 = vmatpush1.msra.mxu0 0.0
        %1936 = vmatprep.subr.mxu0 0.0
        %1937 = vmatpush1.msra.mxu0 0.0
        %1938 = vmatprep.subr.mxu0 0.0
        %1939 = vmatpush1.msra.mxu0 0.0
        %1940 = vmatprep.subr.mxu0 0.0
        %1941 = vmatpush1.msra.mxu0 0.0
        %1942 = vmatprep.subr.mxu0 0.0
        %1943 = vmatpush1.msra.mxu0 0.0
        %1944 = vmatprep.subr.mxu0 0.0
        %1945 = vmatpush1.msra.mxu0 0.0
        %1946 = vmatprep.subr.mxu0 0.0
        %1947 = vmatpush1.msra.mxu0 0.0
        %1948 = vmatprep.subr.mxu0 0.0
        %1949 = vmatpush1.msra.mxu0 0.0
        %1950 = vmatprep.subr.mxu0 0.0
        %1951 = vmatpush1.msra.mxu0 0.0
        %1952 = vmatprep.subr.mxu0 0.0
        %1953 = vmatpush1.msra.mxu0 0.0
        %1954 = vmatprep.subr.mxu0 0.0
        %1955 = vmatpush1.msra.mxu0 0.0
        %1956 = vmatprep.subr.mxu0 0.0
        %1957 = vmatpush1.msra.mxu0 0.0
        %1958 = vmatprep.subr.mxu0 0.0
        %1959 = vmatpush1.msra.mxu0 0.0
        %1960 = vmatprep.subr.mxu0 0.0
        %1961 = vmatpush1.msra.mxu0 0.0
        %1962 = vmatprep.subr.mxu0 0.0
        %1963 = vmatpush1.msra.mxu0 0.0
        %1964 = vmatprep.subr.mxu0 0.0
        %1965 = vmatpush1.msra.mxu0 0.0
        %1966 = vmatprep.subr.mxu0 0.0
        %1967 = vmatpush1.msra.mxu0 0.0
        %1968 = vmatprep.subr.mxu0 0.0
        %1969 = vmatpush1.msra.mxu0 0.0
        %1970 = vmatprep.subr.mxu0 0.0
        %1971 = vmatpush1.msra.mxu0 0.0
        %1972 = vmatprep.subr.mxu0 0.0
        %1973 = vmatpush1.msra.mxu0 0.0
        %1974 = vmatprep.mubr.f32.mxu0 0.0
        %1975 = vmatmul.mubr.f32.gmra.mrb[0].mxu0 %v1906
        %v1976 = vpop.f32.mrb[0].mxu0
        %v1977 = vadd.f32 0.0, %v1976
        %v1978 = vpop.f32.mrb[0].mxu0
        %1979 = vmatprep.mubr.f32.mxu0 0.0
        %1980 = vmatmul.mubr.f32.gmra.mrb[0].mxu0 %v1908
        %v1981 = vpop.f32.mrb[0].mxu0
        %v1982 = vadd.f32 0.0, %v1981
        %v1983 = vpop.f32.mrb[0].mxu0
        %1984 = vdwg.mxu0
        %v1985 = vrcp.pop %v1896
        %v1986 = vrcp.pop %v1899
        %v1987 = vmul.f32 %v1977, %v1985
        %v1988 = vmul.f32 %v1982, %v1986
        %v1990 = vsel %vm564, %v1987, 0
        %v1993 = vsel %vm564, %v1988, 0
        %1995 = vmatprep.subr.mxu0 0.0
        %1996 = vmatpush1.msra.mxu0 %v561
        %1997 = vmatprep.subr.mxu0 0.0
        %1998 = vmatpush1.msra.mxu0 0.0
        %1999 = vmatprep.subr.mxu0 0.0
        %2000 = vmatpush1.msra.mxu0 0.0
        %2001 = vmatprep.subr.mxu0 0.0
        %2002 = vmatpush1.msra.mxu0 0.0
        %2003 = vmatprep.subr.mxu0 0.0
        %2004 = vmatpush1.msra.mxu0 0.0
        %2005 = vmatprep.subr.mxu0 0.0
        %2006 = vmatpush1.msra.mxu0 0.0
        %2007 = vmatprep.subr.mxu0 0.0
        %2008 = vmatpush1.msra.mxu0 0.0
        %2009 = vmatprep.subr.mxu0 0.0
        %2010 = vmatpush1.msra.mxu0 0.0
        %2011 = vmatprep.subr.mxu0 0.0
        %2012 = vmatpush1.msra.mxu0 0.0
        %2013 = vmatprep.subr.mxu0 0.0
        %2014 = vmatpush1.msra.mxu0 0.0
        %2015 = vmatprep.subr.mxu0 0.0
        %2016 = vmatpush1.msra.mxu0 0.0
        %2017 = vmatprep.subr.mxu0 0.0
        %2018 = vmatpush1.msra.mxu0 0.0
        %2019 = vmatprep.subr.mxu0 0.0
        %2020 = vmatpush1.msra.mxu0 0.0
        %2021 = vmatprep.subr.mxu0 0.0
        %2022 = vmatpush1.msra.mxu0 0.0
        %2023 = vmatprep.subr.mxu0 0.0
        %2024 = vmatpush1.msra.mxu0 0.0
        %2025 = vmatprep.subr.mxu0 0.0
        %2026 = vmatpush1.msra.mxu0 0.0
        %2027 = vmatprep.subr.mxu0 0.0
        %2028 = vmatpush1.msra.mxu0 0.0
        %2029 = vmatprep.subr.mxu0 0.0
        %2030 = vmatpush1.msra.mxu0 0.0
        %2031 = vmatprep.subr.mxu0 0.0
        %2032 = vmatpush1.msra.mxu0 0.0
        %2033 = vmatprep.subr.mxu0 0.0
        %2034 = vmatpush1.msra.mxu0 0.0
        %2035 = vmatprep.subr.mxu0 0.0
        %2036 = vmatpush1.msra.mxu0 0.0
        %2037 = vmatprep.subr.mxu0 0.0
        %2038 = vmatpush1.msra.mxu0 0.0
        %2039 = vmatprep.subr.mxu0 0.0
        %2040 = vmatpush1.msra.mxu0 0.0
        %2041 = vmatprep.subr.mxu0 0.0
        %2042 = vmatpush1.msra.mxu0 0.0
        %2043 = vmatprep.subr.mxu0 0.0
        %2044 = vmatpush1.msra.mxu0 0.0
        %2045 = vmatprep.subr.mxu0 0.0
        %2046 = vmatpush1.msra.mxu0 0.0
        %2047 = vmatprep.subr.mxu0 0.0
        %2048 = vmatpush1.msra.mxu0 0.0
        %2049 = vmatprep.subr.mxu0 0.0
        %2050 = vmatpush1.msra.mxu0 0.0
        %2051 = vmatprep.subr.mxu0 0.0
        %2052 = vmatpush1.msra.mxu0 0.0
        %2053 = vmatprep.subr.mxu0 0.0
        %2054 = vmatpush1.msra.mxu0 0.0
        %2055 = vmatprep.subr.mxu0 0.0
        %2056 = vmatpush1.msra.mxu0 0.0
        %2057 = vmatprep.subr.mxu0 0.0
        %2058 = vmatpush1.msra.mxu0 0.0
        %2059 = vmatprep.mubr.f32.mxu0 0.0
        %2060 = vmatmul.mubr.f32.gmra.mrb[0].mxu0 %v1990
        %v2061 = vpop.f32.mrb[0].mxu0
        %v2062 = vadd.f32 0.0, %v2061
        %v2063 = vpop.f32.mrb[0].mxu0
        %2064 = vmatprep.mubr.f32.mxu0 0.0
        %2065 = vmatmul.mubr.f32.gmra.mrb[0].mxu0 %v1993
        %v2066 = vpop.f32.mrb[0].mxu0
        %v2067 = vadd.f32 0.0, %v2066
        %v2068 = vpop.f32.mrb[0].mxu0
        %2069 = vdwg.mxu0
        %v2070 = vadd.f32 %v1687, %v2062
        %v2071 = vadd.f32 %v1688, %v2067
        %v2072 = vld [vmem:[%s4] sm:$0x1]
        %v2074 = vlaneseq
        %v2075 = vshrl.u32 %v2074, 7
        %v2076 = vsub.s32 0, %v2075
        %v2077 = vrot.slane %v2072, %v2076
        %v2079 = vadd.f32 %v2070, %v2077
        %v2080 = vadd.f32 %v2071, %v2077
        %2081 = vst.msk [vmem:[%s286] sm:$0xff] %vm293, %v2079
        %2082 = vst.msk [vmem:[%s286 + $0x8] sm:$0xff] %vm293, %v2080
        %s2083 = sand.u32 %s142, 1
        %s2084 = scalar_lea.sflag [#allocation4], %s2083
        %s2085 = sand.u32 %s142, 1
        %s2086 = smul.addr %s2085, 16
        %s2087 = scalar_lea.vmem [#allocation10], %s2086
        // Predicated region
        $region57: #{tpu_custom_call.1} parent=39 // pred_check
          %p2088 = pneg %p152
        $region58: #{tpu_custom_call.1} parent=39 // pred_check_branch
          %2090 = sbr.rel (%p2088) target = $region60
        $region59: #{tpu_custom_call.1} parent=39 // pred_region
          %s2092 = ssub.s32 256, 256
          %2093 = vsyncadd %s2084, %s2092
          %s2094 = smul.addr %s24, 2
          %s2095 = smul.addr %s2094, 128
          %s2096 = scalar_lea.hbm %s5, %s2095
          %s2097 = sshll.u32 %s2087, 4
          %s2098 = int_to_ptr.vmem [resolvable:$true] %s2097
          %2103 = dma.vmem_to_hbm [thread:$0]  %s2098, 256, %s2096, %s2084, 128, 128, 8
        $region60: #{tpu_custom_call.1} parent=39 // pred_fallthru
          _
      $region40: #{tpu_custom_call.1} parent=5 // pred_fallthru
        _
      %p2104 = scmp.le.s32.totalorder 2, %s19
      // Predicated region
      $region61: #{tpu_custom_call.1} parent=5 // pred_check
        %p2105 = pneg %p2104
      $region62: #{tpu_custom_call.1} parent=5 // pred_check_branch
        %2107 = sbr.rel (%p2105) target = $region64
      $region63: #{tpu_custom_call.1} parent=5 // pred_region
        %s2108 = ssub.s32 %s19, 2
        // Predicated region
        $region65: #{tpu_custom_call.1} parent=63 // pred_check
          %p2109 = pneg %p158
        $region66: #{tpu_custom_call.1} parent=63 // pred_check_branch
          %2111 = sbr.rel (%p2109) target = $region68
        $region67: #{tpu_custom_call.1} parent=63 // pred_region
          %s2112 = sand.u32 %s143, 1
          %s2113 = scalar_lea.sflag [#allocation4], %s2112
          %s2114 = sand.u32 %s143, 1
          %s2115 = smul.addr %s2114, 16
          %s2116 = scalar_lea.vmem [#allocation10], %s2115
          %2117 = dma.done %s2113, 256
        $region68: #{tpu_custom_call.1} parent=63 // pred_fallthru
          _
      $region64: #{tpu_custom_call.1} parent=5 // pred_fallthru
        _
    $region6: #{tpu_custom_call.1} parent=1 // loop_footer
      %s23 = sadd.s32 1, %s19
    $region7: #{tpu_custom_call.1} parent=1 // loop_footer_branch
      %18 = sbr.rel target = $region3
    $region8: #{tpu_custom_call.1} parent=1 // loop_exit
      _
    %2118 = vsyncpa [#allocation3], 1
    %s2119 = scalar_lea.sflag [#allocation3], 1
    %2120 = vsyncpa %s2119, 1
    %2121 = vsyncpa [#allocation6], 1
    %2122 = vsyncpa [#allocation9], 1
    %2123 = vsyncpa [#allocation4], 1
    %s2124 = scalar_lea.sflag [#allocation4], 1
    %2125 = vsyncpa %s2124, 1

</llo_original>
